<compile_context>
chip_gen: v7x
topology: tpu7x:2x2x1
jax: 0.10.0
libtpu: 0.0.40
codegen_flags: <defaults>
</compile_context>

<pallas_src>
import functools

import jax
import jax.numpy as jnp
from jax.experimental import pallas as pl
from jax.experimental.pallas import tpu as pltpu


KS = (1, 3, 5)                       # conv kernel sizes of the three units
PADMAX = max(k // 2 for k in KS)     # pad once for the largest kernel (=2)


# ------------------------------ Pallas kernel ------------------------------ #

def _fused_kernel(xp_ref, wp_ref, wt_ref, wlp_ref, wlt_ref, row_ref, col_ref,
                  o_ref, *, T, D):
    """All six TransformerUnits + final Norm for one batch element.

    xp_ref : (1, T+2*PADMAX, D+2*PADMAX) zero-padded input block
    wp_ref : (T, sum_i K_i*T)   pitch conv weights, im2col layout
    wt_ref : (sum_i K_i*D, D)   time conv weights, per-tap transposed blocks
    wlp_ref: (3*D, D)           pitch linear weights, (in, out) per unit
    wlt_ref: (3*T, T)           time linear weights, (out, in) per unit
    row_ref: (14, D) rows: gamma_p[0:3], beta_p[3:6], blin_p[6:9],
                            bconv_t[9:12], norm_alpha[12], norm_bias[13]
    col_ref: (T, 12) cols: bconv_p[0:3], gamma_t[3:6], beta_t[6:9], blin_t[9:12]
    o_ref  : (1, T, D)
    """
    xp = xp_ref[0]                                   # (T+2*PADMAX, D+2*PADMAX)
    wpv = wp_ref[...]
    wtv = wt_ref[...]
    wlpv = wlp_ref[...]
    wltv = wlt_ref[...]
    rows = row_ref[...]
    cols = col_ref[...]

    acc = jnp.zeros((T, D), jnp.float32)
    wp_off = 0
    wt_off = 0
    for i, K in enumerate(KS):
        pad = K // 2
        c0 = PADMAX - pad

        # -------- pitch unit i: channels=T, conv over D, LN over D ----------
        # im2col: stack the K lane-shifted windows along the contraction axis
        # (sublane concat, 8-aligned) -> one MXU dot instead of K tiny ones.
        slabs = [xp[PADMAX:PADMAX + T, c0 + t:c0 + t + D] for t in range(K)]
        xs = slabs[0] if K == 1 else jnp.concatenate(slabs, axis=0)   # (K*T, D)
        wp = wpv[:, wp_off:wp_off + K * T]                            # (T, K*T)
        conv = jnp.dot(wp, xs, preferred_element_type=jnp.float32)    # (T, D)
        conv = conv + cols[:, i:i + 1]                                # bconv (T,1)
        h = jnp.maximum(conv, 0.0)
        mu = jnp.mean(h, axis=-1, keepdims=True)                      # LN over D
        dh = h - mu
        var = jnp.mean(dh * dh, axis=-1, keepdims=True)
        normed = (dh * jax.lax.rsqrt(var + 1e-5) * rows[i:i + 1, :]
                  + rows[3 + i:4 + i, :])
        lin = (jnp.dot(normed, wlpv[i * D:(i + 1) * D, :],
                       preferred_element_type=jnp.float32)
               + rows[6 + i:7 + i, :])
        acc = acc + jnp.maximum(lin, 0.0)
        wp_off += K * T

        # -------- time unit i: channels=D, conv over T, LN over T -----------
        # Computed directly in (T, D) layout (no physical transpose).
        xt0 = xp[c0:c0 + T, PADMAX:PADMAX + D]                        # (T, D)
        convt = jnp.dot(xt0, wtv[wt_off:wt_off + D, :],
                        preferred_element_type=jnp.float32)           # (T, D)
        for t in range(1, K):
            xt = xp[c0 + t:c0 + t + T, PADMAX:PADMAX + D]
            convt = convt + jnp.dot(xt, wtv[wt_off + t * D:wt_off + (t + 1) * D, :],
                                    preferred_element_type=jnp.float32)
        convt = convt + rows[9 + i:10 + i, :]                         # bconv (1,D)
        ht = jnp.maximum(convt, 0.0)
        mut = jnp.mean(ht, axis=0, keepdims=True)                     # LN over T
        dt = ht - mut
        vart = jnp.mean(dt * dt, axis=0, keepdims=True)
        normt = (dt * jax.lax.rsqrt(vart + 1e-5) * cols[:, 3 + i:4 + i]
                 + cols[:, 6 + i:7 + i])
        lint = (jnp.dot(wltv[i * T:(i + 1) * T, :], normt,             # T->T linear
                        preferred_element_type=jnp.float32)
                + cols[:, 9 + i:10 + i])
        acc = acc + jnp.maximum(lint, 0.0)
        wt_off += K * D

    # -------- final custom Norm: alpha*(x-mean)/(std_unbiased+1e-6)+bias ----
    mu = jnp.mean(acc, axis=-1, keepdims=True)
    diff = acc - mu
    var = jnp.sum(diff * diff, axis=-1, keepdims=True) / (D - 1)      # torch .std (ddof=1)
    inv = pl.reciprocal(jnp.sqrt(var) + 1e-6)                         # EUP, exact
    o_ref[0] = rows[12:13, :] * diff * inv + rows[13:14, :]


# ------------------------------ JAX wrapper -------------------------------- #

def multi_transformer_layer(latents, packed):
    """latents: (B, T, D) float32 -> (B, T, D)."""
    B, T, D = latents.shape
    Tp, Dp = T + 2 * PADMAX, D + 2 * PADMAX
    xp = jnp.pad(latents, ((0, 0), (PADMAX, PADMAX), (PADMAX, PADMAX)))
    wp_all, wt_all, wlp_all, wlt_all, rowvecs, colvecs = packed

    def full(a):  # whole-array block, resident across the batch grid
        return pl.BlockSpec(a.shape, lambda b, _nd=a.ndim: (0,) * _nd)

    kern = functools.partial(_fused_kernel, T=T, D=D)
    return pl.pallas_call(
        kern,
        out_shape=jax.ShapeDtypeStruct((B, T, D), jnp.float32),
        grid=(B,),
        in_specs=[
            pl.BlockSpec((1, Tp, Dp), lambda b: (b, 0, 0)),
            full(wp_all), full(wt_all), full(wlp_all), full(wlt_all),
            full(rowvecs), full(colvecs),
        ],
        out_specs=pl.BlockSpec((1, T, D), lambda b: (b, 0, 0)),
        compiler_params=pltpu.CompilerParams(dimension_semantics=("parallel",)),
    )(xp, wp_all, wt_all, wlp_all, wlt_all, rowvecs, colvecs)


# ------------------------- parameter initialization ------------------------ #

def init_unit_params(key, C, L, K):
    k1, k2, k3, k4 = jax.random.split(key, 4)
    wconv = 0.1 * jax.random.normal(k1, (K, C, C), jnp.float32)   # taps-first layout
    bconv = 0.1 * jax.random.normal(k2, (C, 1), jnp.float32)
    gamma = jnp.ones((1, L), jnp.float32)                         # nn.LayerNorm init
    beta = jnp.zeros((1, L), jnp.float32)
    wlin_t = 0.1 * jax.random.normal(k3, (L, L), jnp.float32)     # (in, out) = W.T
    blin = 0.1 * jax.random.normal(k4, (1, L), jnp.float32)
    return (wconv, bconv, gamma, beta, wlin_t, blin)


def init_params(key, time_step, d_model):
    keys = jax.random.split(key, 6)
    pitch = [init_unit_params(keys[i], time_step, d_model, KS[i]) for i in range(3)]
    time = [init_unit_params(keys[3 + i], d_model, time_step, KS[i]) for i in range(3)]
    return {
        "pitch": pitch,
        "time": time,
        "norm_alpha": jnp.ones((1, d_model), jnp.float32),
        "norm_bias": jnp.zeros((1, d_model), jnp.float32),
    }


def pack_params(params):
    """Pack the 38 tiny per-unit tensors into 6 kernel-friendly arrays."""
    T = params["pitch"][0][0].shape[1]   # (K, T, T)
    D = params["time"][0][0].shape[1]    # (K, D, D)

    wp_blocks, wt_blocks, wlp_blocks, wlt_blocks = [], [], [], []
    gp, bp, blp, bct = [], [], [], []
    bcp, gt, bt, blt = [], [], [], []
    for i, K in enumerate(KS):
        wconv, bconv, gamma, beta, wlin_t, blin = params["pitch"][i]
        # wp_flat[t_o, tap*T + t_i] = wconv[tap, t_o, t_i]
        wp_blocks.append(jnp.transpose(wconv, (1, 0, 2)).reshape(T, K * T))
        bcp.append(bconv[:, 0])
        gp.append(gamma[0]); bp.append(beta[0]); blp.append(blin[0])
        wlp_blocks.append(wlin_t)                     # (D, D) in (in, out)

        wconv, bconv, gamma, beta, wlin_t, blin = params["time"][i]
        # wt_flat[tap*D + d_i, d_o] = wconv[tap, d_o, d_i]
        wt_blocks.append(jnp.transpose(wconv, (0, 2, 1)).reshape(K * D, D))
        bct.append(bconv[:, 0])
        gt.append(gamma[0]); bt.append(beta[0]); blt.append(blin[0])
        wlt_blocks.append(wlin_t.T)                   # back to (out, in) for left matmul

    wp_all = jnp.concatenate(wp_blocks, axis=1)                      # (T, 72)
    wt_all = jnp.concatenate(wt_blocks, axis=0)                      # (288, D)
    wlp_all = jnp.concatenate(wlp_blocks, axis=0)                    # (3*D, D)
    wlt_all = jnp.concatenate(wlt_blocks, axis=0)                    # (3*T, T)
    rowvecs = jnp.stack(gp + bp + blp + bct
                        + [params["norm_alpha"][0], params["norm_bias"][0]],
                        axis=0)                                      # (14, D)
    colvecs = jnp.stack(bcp + gt + bt + blt, axis=1)                 # (T, 12)
    return (wp_all, wt_all, wlp_all, wlt_all, rowvecs, colvecs)


# ----------------------------- pure-JAX reference --------------------------- #

def _unit_ref(x, params, K):
    wconv, bconv, gamma, beta, wlin_t, blin = params
    w = jnp.transpose(wconv, (1, 2, 0))                 # (O, I, K)
    pad = K // 2
    conv = jax.lax.conv_general_dilated(
        x, w, window_strides=(1,), padding=[(pad, pad)],
        dimension_numbers=("NCH", "OIH", "NCH"))
    conv = conv + bconv[None, :, :]
    h = jnp.maximum(conv, 0.0)
    mu = jnp.mean(h, -1, keepdims=True)
    var = jnp.mean((h - mu) ** 2, -1, keepdims=True)
    normed = (h - mu) / jnp.sqrt(var + 1e-5) * gamma[None] + beta[None]
    return jnp.maximum(normed @ wlin_t + blin[None], 0.0)


def _layer_ref(latents, params):
    pitch = sum(_unit_ref(latents, params["pitch"][i], KS[i]) for i in range(3))
    lt = jnp.transpose(latents, (0, 2, 1))
    time = sum(_unit_ref(lt, params["time"][i], KS[i]) for i in range(3))
    total = pitch + jnp.transpose(time, (0, 2, 1))
    mu = jnp.mean(total, -1, keepdims=True)
    std = jnp.std(total, -1, keepdims=True, ddof=1)
    return params["norm_alpha"][None] * (total - mu) / (std + 1e-6) + params["norm_bias"][None]


# ---------------------------------- main ----------------------------------- #

if __name__ == "__main__":
    B, time_step, d_model, heads = 2, 8, 32, 2   # heads unused (attention is dead code)

    key = jax.random.PRNGKey(0)
    k_x, k_p = jax.random.split(key)
    latents = jax.random.normal(k_x, (B, time_step, d_model), jnp.float32)
    params = init_params(k_p, time_step, d_model)
    packed = pack_params(params)

    fwd = jax.jit(multi_transformer_layer)
    out = jax.block_until_ready(fwd(latents, packed))
    ref = jax.block_until_ready(_layer_ref(latents, params))

    assert out.shape == (B, time_step, d_model)
    assert jnp.allclose(out, ref, rtol=1e-4, atol=1e-4), float(jnp.max(jnp.abs(out - ref)))
    print("KERNEL_OK")
</pallas_src>

<mosaic_0001>
module attributes {stable_mosaic.version = 11 : i64} {
  func.func @_fused_kernel(%arg0: i32, %arg1: memref<1x12x36xf32, #tpu.memory_space<vmem>>, %arg2: memref<8x72xf32, #tpu.memory_space<vmem>>, %arg3: memref<288x32xf32, #tpu.memory_space<vmem>>, %arg4: memref<96x32xf32, #tpu.memory_space<vmem>>, %arg5: memref<24x8xf32, #tpu.memory_space<vmem>>, %arg6: memref<14x32xf32, #tpu.memory_space<vmem>>, %arg7: memref<8x12xf32, #tpu.memory_space<vmem>>, %arg8: memref<1x8x32xf32, #tpu.memory_space<vmem>>) attributes {dimension_semantics = [#tpu.dimension_semantics<parallel>], iteration_bounds = array<i64: 2>, scalar_prefetch = 0 : i64, scratch_operands = 0 : i64, tpu.core_type = #tpu.core_type<tc>, window_params = [{transform_indices = @transform_0, window_bounds = array<i64: 1, 12, 36>}, {pipeline_mode = #tpu.pipeline_mode<synchronous>, transform_indices = @transform_1, window_bounds = array<i64: 8, 72>}, {pipeline_mode = #tpu.pipeline_mode<synchronous>, transform_indices = @transform_2, window_bounds = array<i64: 288, 32>}, {pipeline_mode = #tpu.pipeline_mode<synchronous>, transform_indices = @transform_3, window_bounds = array<i64: 96, 32>}, {pipeline_mode = #tpu.pipeline_mode<synchronous>, transform_indices = @transform_4, window_bounds = array<i64: 24, 8>}, {pipeline_mode = #tpu.pipeline_mode<synchronous>, transform_indices = @transform_5, window_bounds = array<i64: 14, 32>}, {pipeline_mode = #tpu.pipeline_mode<synchronous>, transform_indices = @transform_6, window_bounds = array<i64: 8, 12>}, {transform_indices = @transform_7, window_bounds = array<i64: 1, 8, 32>}]} {
    %c0 = arith.constant 0 : index
    %c0_0 = arith.constant 0 : index
    %c0_1 = arith.constant 0 : index
    %0 = vector.load %arg1[%c0, %c0_0, %c0_1] : memref<1x12x36xf32, #tpu.memory_space<vmem>>, vector<1x12x36xf32>
    %1 = vector.shape_cast %0 : vector<1x12x36xf32> to vector<12x36xf32>
    %c0_2 = arith.constant 0 : index
    %c0_3 = arith.constant 0 : index
    %2 = vector.load %arg2[%c0_2, %c0_3] : memref<8x72xf32, #tpu.memory_space<vmem>>, vector<8x72xf32>
    %c0_4 = arith.constant 0 : index
    %c0_5 = arith.constant 0 : index
    %3 = vector.load %arg3[%c0_4, %c0_5] : memref<288x32xf32, #tpu.memory_space<vmem>>, vector<288x32xf32>
    %c0_6 = arith.constant 0 : index
    %c0_7 = arith.constant 0 : index
    %4 = vector.load %arg4[%c0_6, %c0_7] : memref<96x32xf32, #tpu.memory_space<vmem>>, vector<96x32xf32>
    %c0_8 = arith.constant 0 : index
    %c0_9 = arith.constant 0 : index
    %5 = vector.load %arg5[%c0_8, %c0_9] : memref<24x8xf32, #tpu.memory_space<vmem>>, vector<24x8xf32>
    %c0_10 = arith.constant 0 : index
    %c0_11 = arith.constant 0 : index
    %6 = vector.load %arg6[%c0_10, %c0_11] : memref<14x32xf32, #tpu.memory_space<vmem>>, vector<14x32xf32>
    %c0_12 = arith.constant 0 : index
    %c0_13 = arith.constant 0 : index
    %7 = vector.load %arg7[%c0_12, %c0_13] : memref<8x12xf32, #tpu.memory_space<vmem>>, vector<8x12xf32>
    %cst = arith.constant 0.000000e+00 : f32
    %8 = vector.broadcast %cst : f32 to vector<8x32xf32>
    %9 = vector.extract_strided_slice %1 {offsets = [2, 2], sizes = [8, 32], strides = [1, 1]} : vector<12x36xf32> to vector<8x32xf32>
    %10 = vector.extract_strided_slice %2 {offsets = [0, 0], sizes = [8, 8], strides = [1, 1]} : vector<8x72xf32> to vector<8x8xf32>
    %cst_14 = arith.constant dense<0.000000e+00> : vector<8x32xf32>
    %11 = tpu.matmul %10, %9, %cst_14 {dimension_numbers = #tpu.dot_dimension_numbers<[1], [0], [0], [1], [0, 0, 1, 1], [], []>} : vector<8x8xf32>, vector<8x32xf32>, vector<8x32xf32> -> vector<8x32xf32>
    %12 = vector.extract_strided_slice %7 {offsets = [0, 0], sizes = [8, 1], strides = [1, 1]} : vector<8x12xf32> to vector<8x1xf32>
    %13 = vector.broadcast %12 : vector<8x1xf32> to vector<8x32xf32>
    %14 = arith.addf %11, %13 : vector<8x32xf32>
    %cst_15 = arith.constant 0.000000e+00 : f32
    %15 = vector.broadcast %cst_15 : f32 to vector<8x32xf32>
    %16 = arith.maximumf %14, %15 : vector<8x32xf32>
    %cst_16 = arith.constant dense<0.000000e+00> : vector<8xf32>
    %17 = vector.multi_reduction <add>, %16, %cst_16 [1] : vector<8x32xf32> to vector<8xf32>
    %18 = vector.shape_cast %17 : vector<8xf32> to vector<8x1xf32>
    %cst_17 = arith.constant 3.200000e+01 : f32
    %19 = vector.broadcast %cst_17 : f32 to vector<8x1xf32>
    %20 = arith.divf %18, %19 : vector<8x1xf32>
    %21 = vector.broadcast %20 : vector<8x1xf32> to vector<8x32xf32>
    %22 = arith.subf %16, %21 : vector<8x32xf32>
    %23 = arith.mulf %22, %22 : vector<8x32xf32>
    %cst_18 = arith.constant dense<0.000000e+00> : vector<8xf32>
    %24 = vector.multi_reduction <add>, %23, %cst_18 [1] : vector<8x32xf32> to vector<8xf32>
    %25 = vector.shape_cast %24 : vector<8xf32> to vector<8x1xf32>
    %cst_19 = arith.constant 3.200000e+01 : f32
    %26 = vector.broadcast %cst_19 : f32 to vector<8x1xf32>
    %27 = arith.divf %25, %26 : vector<8x1xf32>
    %cst_20 = arith.constant 9.99999974E-6 : f32
    %28 = vector.broadcast %cst_20 : f32 to vector<8x1xf32>
    %29 = arith.addf %27, %28 : vector<8x1xf32>
    %30 = math.rsqrt %29 : vector<8x1xf32>
    %31 = vector.broadcast %30 : vector<8x1xf32> to vector<8x32xf32>
    %32 = arith.mulf %22, %31 : vector<8x32xf32>
    %33 = vector.extract_strided_slice %6 {offsets = [0, 0], sizes = [1, 32], strides = [1, 1]} : vector<14x32xf32> to vector<1x32xf32>
    %34 = vector.broadcast %33 : vector<1x32xf32> to vector<8x32xf32>
    %35 = arith.mulf %32, %34 : vector<8x32xf32>
    %36 = vector.extract_strided_slice %6 {offsets = [3, 0], sizes = [1, 32], strides = [1, 1]} : vector<14x32xf32> to vector<1x32xf32>
    %37 = vector.broadcast %36 : vector<1x32xf32> to vector<8x32xf32>
    %38 = arith.addf %35, %37 : vector<8x32xf32>
    %39 = vector.extract_strided_slice %4 {offsets = [0, 0], sizes = [32, 32], strides = [1, 1]} : vector<96x32xf32> to vector<32x32xf32>
    %cst_21 = arith.constant dense<0.000000e+00> : vector<8x32xf32>
    %40 = tpu.matmul %38, %39, %cst_21 {dimension_numbers = #tpu.dot_dimension_numbers<[1], [0], [0], [1], [0, 0, 1, 1], [], []>} : vector<8x32xf32>, vector<32x32xf32>, vector<8x32xf32> -> vector<8x32xf32>
    %41 = vector.extract_strided_slice %6 {offsets = [6, 0], sizes = [1, 32], strides = [1, 1]} : vector<14x32xf32> to vector<1x32xf32>
    %42 = vector.broadcast %41 : vector<1x32xf32> to vector<8x32xf32>
    %43 = arith.addf %40, %42 : vector<8x32xf32>
    %cst_22 = arith.constant 0.000000e+00 : f32
    %44 = vector.broadcast %cst_22 : f32 to vector<8x32xf32>
    %45 = arith.maximumf %43, %44 : vector<8x32xf32>
    %46 = arith.addf %8, %45 : vector<8x32xf32>
    %47 = vector.extract_strided_slice %1 {offsets = [2, 2], sizes = [8, 32], strides = [1, 1]} : vector<12x36xf32> to vector<8x32xf32>
    %48 = vector.extract_strided_slice %3 {offsets = [0, 0], sizes = [32, 32], strides = [1, 1]} : vector<288x32xf32> to vector<32x32xf32>
    %cst_23 = arith.constant dense<0.000000e+00> : vector<8x32xf32>
    %49 = tpu.matmul %47, %48, %cst_23 {dimension_numbers = #tpu.dot_dimension_numbers<[1], [0], [0], [1], [0, 0, 1, 1], [], []>} : vector<8x32xf32>, vector<32x32xf32>, vector<8x32xf32> -> vector<8x32xf32>
    %50 = vector.extract_strided_slice %6 {offsets = [9, 0], sizes = [1, 32], strides = [1, 1]} : vector<14x32xf32> to vector<1x32xf32>
    %51 = vector.broadcast %50 : vector<1x32xf32> to vector<8x32xf32>
    %52 = arith.addf %49, %51 : vector<8x32xf32>
    %cst_24 = arith.constant 0.000000e+00 : f32
    %53 = vector.broadcast %cst_24 : f32 to vector<8x32xf32>
    %54 = arith.maximumf %52, %53 : vector<8x32xf32>
    %cst_25 = arith.constant dense<0.000000e+00> : vector<32xf32>
    %55 = vector.multi_reduction <add>, %54, %cst_25 [0] : vector<8x32xf32> to vector<32xf32>
    %56 = vector.shape_cast %55 : vector<32xf32> to vector<1x32xf32>
    %cst_26 = arith.constant 8.000000e+00 : f32
    %57 = vector.broadcast %cst_26 : f32 to vector<1x32xf32>
    %58 = arith.divf %56, %57 : vector<1x32xf32>
    %59 = vector.broadcast %58 : vector<1x32xf32> to vector<8x32xf32>
    %60 = arith.subf %54, %59 : vector<8x32xf32>
    %61 = arith.mulf %60, %60 : vector<8x32xf32>
    %cst_27 = arith.constant dense<0.000000e+00> : vector<32xf32>
    %62 = vector.multi_reduction <add>, %61, %cst_27 [0] : vector<8x32xf32> to vector<32xf32>
    %63 = vector.shape_cast %62 : vector<32xf32> to vector<1x32xf32>
    %cst_28 = arith.constant 8.000000e+00 : f32
    %64 = vector.broadcast %cst_28 : f32 to vector<1x32xf32>
    %65 = arith.divf %63, %64 : vector<1x32xf32>
    %cst_29 = arith.constant 9.99999974E-6 : f32
    %66 = vector.broadcast %cst_29 : f32 to vector<1x32xf32>
    %67 = arith.addf %65, %66 : vector<1x32xf32>
    %68 = math.rsqrt %67 : vector<1x32xf32>
    %69 = vector.broadcast %68 : vector<1x32xf32> to vector<8x32xf32>
    %70 = arith.mulf %60, %69 : vector<8x32xf32>
    %71 = vector.extract_strided_slice %7 {offsets = [0, 3], sizes = [8, 1], strides = [1, 1]} : vector<8x12xf32> to vector<8x1xf32>
    %72 = vector.broadcast %71 : vector<8x1xf32> to vector<8x32xf32>
    %73 = arith.mulf %70, %72 : vector<8x32xf32>
    %74 = vector.extract_strided_slice %7 {offsets = [0, 6], sizes = [8, 1], strides = [1, 1]} : vector<8x12xf32> to vector<8x1xf32>
    %75 = vector.broadcast %74 : vector<8x1xf32> to vector<8x32xf32>
    %76 = arith.addf %73, %75 : vector<8x32xf32>
    %77 = vector.extract_strided_slice %5 {offsets = [0, 0], sizes = [8, 8], strides = [1, 1]} : vector<24x8xf32> to vector<8x8xf32>
    %cst_30 = arith.constant dense<0.000000e+00> : vector<8x32xf32>
    %78 = tpu.matmul %77, %76, %cst_30 {dimension_numbers = #tpu.dot_dimension_numbers<[1], [0], [0], [1], [0, 0, 1, 1], [], []>} : vector<8x8xf32>, vector<8x32xf32>, vector<8x32xf32> -> vector<8x32xf32>
    %79 = vector.extract_strided_slice %7 {offsets = [0, 9], sizes = [8, 1], strides = [1, 1]} : vector<8x12xf32> to vector<8x1xf32>
    %80 = vector.broadcast %79 : vector<8x1xf32> to vector<8x32xf32>
    %81 = arith.addf %78, %80 : vector<8x32xf32>
    %cst_31 = arith.constant 0.000000e+00 : f32
    %82 = vector.broadcast %cst_31 : f32 to vector<8x32xf32>
    %83 = arith.maximumf %81, %82 : vector<8x32xf32>
    %84 = arith.addf %46, %83 : vector<8x32xf32>
    %85 = vector.extract_strided_slice %1 {offsets = [2, 1], sizes = [8, 32], strides = [1, 1]} : vector<12x36xf32> to vector<8x32xf32>
    %86 = vector.extract_strided_slice %1 {offsets = [2, 2], sizes = [8, 32], strides = [1, 1]} : vector<12x36xf32> to vector<8x32xf32>
    %87 = vector.extract_strided_slice %1 {offsets = [2, 3], sizes = [8, 32], strides = [1, 1]} : vector<12x36xf32> to vector<8x32xf32>
    %88 = tpu.concatenate %85, %86, %87 in 0 : vector<8x32xf32>, vector<8x32xf32>, vector<8x32xf32> -> vector<24x32xf32>
    %89 = vector.extract_strided_slice %2 {offsets = [0, 8], sizes = [8, 24], strides = [1, 1]} : vector<8x72xf32> to vector<8x24xf32>
    %cst_32 = arith.constant dense<0.000000e+00> : vector<8x32xf32>
    %90 = tpu.matmul %89, %88, %cst_32 {dimension_numbers = #tpu.dot_dimension_numbers<[1], [0], [0], [1], [0, 0, 1, 1], [], []>} : vector<8x24xf32>, vector<24x32xf32>, vector<8x32xf32> -> vector<8x32xf32>
    %91 = vector.extract_strided_slice %7 {offsets = [0, 1], sizes = [8, 1], strides = [1, 1]} : vector<8x12xf32> to vector<8x1xf32>
    %92 = vector.broadcast %91 : vector<8x1xf32> to vector<8x32xf32>
    %93 = arith.addf %90, %92 : vector<8x32xf32>
    %cst_33 = arith.constant 0.000000e+00 : f32
    %94 = vector.broadcast %cst_33 : f32 to vector<8x32xf32>
    %95 = arith.maximumf %93, %94 : vector<8x32xf32>
    %cst_34 = arith.constant dense<0.000000e+00> : vector<8xf32>
    %96 = vector.multi_reduction <add>, %95, %cst_34 [1] : vector<8x32xf32> to vector<8xf32>
    %97 = vector.shape_cast %96 : vector<8xf32> to vector<8x1xf32>
    %cst_35 = arith.constant 3.200000e+01 : f32
    %98 = vector.broadcast %cst_35 : f32 to vector<8x1xf32>
    %99 = arith.divf %97, %98 : vector<8x1xf32>
    %100 = vector.broadcast %99 : vector<8x1xf32> to vector<8x32xf32>
    %101 = arith.subf %95, %100 : vector<8x32xf32>
    %102 = arith.mulf %101, %101 : vector<8x32xf32>
    %cst_36 = arith.constant dense<0.000000e+00> : vector<8xf32>
    %103 = vector.multi_reduction <add>, %102, %cst_36 [1] : vector<8x32xf32> to vector<8xf32>
    %104 = vector.shape_cast %103 : vector<8xf32> to vector<8x1xf32>
    %cst_37 = arith.constant 3.200000e+01 : f32
    %105 = vector.broadcast %cst_37 : f32 to vector<8x1xf32>
    %106 = arith.divf %104, %105 : vector<8x1xf32>
    %cst_38 = arith.constant 9.99999974E-6 : f32
    %107 = vector.broadcast %cst_38 : f32 to vector<8x1xf32>
    %108 = arith.addf %106, %107 : vector<8x1xf32>
    %109 = math.rsqrt %108 : vector<8x1xf32>
    %110 = vector.broadcast %109 : vector<8x1xf32> to vector<8x32xf32>
    %111 = arith.mulf %101, %110 : vector<8x32xf32>
    %112 = vector.extract_strided_slice %6 {offsets = [1, 0], sizes = [1, 32], strides = [1, 1]} : vector<14x32xf32> to vector<1x32xf32>
    %113 = vector.broadcast %112 : vector<1x32xf32> to vector<8x32xf32>
    %114 = arith.mulf %111, %113 : vector<8x32xf32>
    %115 = vector.extract_strided_slice %6 {offsets = [4, 0], sizes = [1, 32], strides = [1, 1]} : vector<14x32xf32> to vector<1x32xf32>
    %116 = vector.broadcast %115 : vector<1x32xf32> to vector<8x32xf32>
    %117 = arith.addf %114, %116 : vector<8x32xf32>
    %118 = vector.extract_strided_slice %4 {offsets = [32, 0], sizes = [32, 32], strides = [1, 1]} : vector<96x32xf32> to vector<32x32xf32>
    %cst_39 = arith.constant dense<0.000000e+00> : vector<8x32xf32>
    %119 = tpu.matmul %117, %118, %cst_39 {dimension_numbers = #tpu.dot_dimension_numbers<[1], [0], [0], [1], [0, 0, 1, 1], [], []>} : vector<8x32xf32>, vector<32x32xf32>, vector<8x32xf32> -> vector<8x32xf32>
    %120 = vector.extract_strided_slice %6 {offsets = [7, 0], sizes = [1, 32], strides = [1, 1]} : vector<14x32xf32> to vector<1x32xf32>
    %121 = vector.broadcast %120 : vector<1x32xf32> to vector<8x32xf32>
    %122 = arith.addf %119, %121 : vector<8x32xf32>
    %cst_40 = arith.constant 0.000000e+00 : f32
    %123 = vector.broadcast %cst_40 : f32 to vector<8x32xf32>
    %124 = arith.maximumf %122, %123 : vector<8x32xf32>
    %125 = arith.addf %84, %124 : vector<8x32xf32>
    %126 = vector.extract_strided_slice %1 {offsets = [1, 2], sizes = [8, 32], strides = [1, 1]} : vector<12x36xf32> to vector<8x32xf32>
    %127 = vector.extract_strided_slice %3 {offsets = [32, 0], sizes = [32, 32], strides = [1, 1]} : vector<288x32xf32> to vector<32x32xf32>
    %cst_41 = arith.constant dense<0.000000e+00> : vector<8x32xf32>
    %128 = tpu.matmul %126, %127, %cst_41 {dimension_numbers = #tpu.dot_dimension_numbers<[1], [0], [0], [1], [0, 0, 1, 1], [], []>} : vector<8x32xf32>, vector<32x32xf32>, vector<8x32xf32> -> vector<8x32xf32>
    %129 = vector.extract_strided_slice %1 {offsets = [2, 2], sizes = [8, 32], strides = [1, 1]} : vector<12x36xf32> to vector<8x32xf32>
    %130 = vector.extract_strided_slice %3 {offsets = [64, 0], sizes = [32, 32], strides = [1, 1]} : vector<288x32xf32> to vector<32x32xf32>
    %cst_42 = arith.constant dense<0.000000e+00> : vector<8x32xf32>
    %131 = tpu.matmul %129, %130, %cst_42 {dimension_numbers = #tpu.dot_dimension_numbers<[1], [0], [0], [1], [0, 0, 1, 1], [], []>} : vector<8x32xf32>, vector<32x32xf32>, vector<8x32xf32> -> vector<8x32xf32>
    %132 = arith.addf %128, %131 : vector<8x32xf32>
    %133 = vector.extract_strided_slice %1 {offsets = [3, 2], sizes = [8, 32], strides = [1, 1]} : vector<12x36xf32> to vector<8x32xf32>
    %134 = vector.extract_strided_slice %3 {offsets = [96, 0], sizes = [32, 32], strides = [1, 1]} : vector<288x32xf32> to vector<32x32xf32>
    %cst_43 = arith.constant dense<0.000000e+00> : vector<8x32xf32>
    %135 = tpu.matmul %133, %134, %cst_43 {dimension_numbers = #tpu.dot_dimension_numbers<[1], [0], [0], [1], [0, 0, 1, 1], [], []>} : vector<8x32xf32>, vector<32x32xf32>, vector<8x32xf32> -> vector<8x32xf32>
    %136 = arith.addf %132, %135 : vector<8x32xf32>
    %137 = vector.extract_strided_slice %6 {offsets = [10, 0], sizes = [1, 32], strides = [1, 1]} : vector<14x32xf32> to vector<1x32xf32>
    %138 = vector.broadcast %137 : vector<1x32xf32> to vector<8x32xf32>
    %139 = arith.addf %136, %138 : vector<8x32xf32>
    %cst_44 = arith.constant 0.000000e+00 : f32
    %140 = vector.broadcast %cst_44 : f32 to vector<8x32xf32>
    %141 = arith.maximumf %139, %140 : vector<8x32xf32>
    %cst_45 = arith.constant dense<0.000000e+00> : vector<32xf32>
    %142 = vector.multi_reduction <add>, %141, %cst_45 [0] : vector<8x32xf32> to vector<32xf32>
    %143 = vector.shape_cast %142 : vector<32xf32> to vector<1x32xf32>
    %cst_46 = arith.constant 8.000000e+00 : f32
    %144 = vector.broadcast %cst_46 : f32 to vector<1x32xf32>
    %145 = arith.divf %143, %144 : vector<1x32xf32>
    %146 = vector.broadcast %145 : vector<1x32xf32> to vector<8x32xf32>
    %147 = arith.subf %141, %146 : vector<8x32xf32>
    %148 = arith.mulf %147, %147 : vector<8x32xf32>
    %cst_47 = arith.constant dense<0.000000e+00> : vector<32xf32>
    %149 = vector.multi_reduction <add>, %148, %cst_47 [0] : vector<8x32xf32> to vector<32xf32>
    %150 = vector.shape_cast %149 : vector<32xf32> to vector<1x32xf32>
    %cst_48 = arith.constant 8.000000e+00 : f32
    %151 = vector.broadcast %cst_48 : f32 to vector<1x32xf32>
    %152 = arith.divf %150, %151 : vector<1x32xf32>
    %cst_49 = arith.constant 9.99999974E-6 : f32
    %153 = vector.broadcast %cst_49 : f32 to vector<1x32xf32>
    %154 = arith.addf %152, %153 : vector<1x32xf32>
    %155 = math.rsqrt %154 : vector<1x32xf32>
    %156 = vector.broadcast %155 : vector<1x32xf32> to vector<8x32xf32>
    %157 = arith.mulf %147, %156 : vector<8x32xf32>
    %158 = vector.extract_strided_slice %7 {offsets = [0, 4], sizes = [8, 1], strides = [1, 1]} : vector<8x12xf32> to vector<8x1xf32>
    %159 = vector.broadcast %158 : vector<8x1xf32> to vector<8x32xf32>
    %160 = arith.mulf %157, %159 : vector<8x32xf32>
    %161 = vector.extract_strided_slice %7 {offsets = [0, 7], sizes = [8, 1], strides = [1, 1]} : vector<8x12xf32> to vector<8x1xf32>
    %162 = vector.broadcast %161 : vector<8x1xf32> to vector<8x32xf32>
    %163 = arith.addf %160, %162 : vector<8x32xf32>
    %164 = vector.extract_strided_slice %5 {offsets = [8, 0], sizes = [8, 8], strides = [1, 1]} : vector<24x8xf32> to vector<8x8xf32>
    %cst_50 = arith.constant dense<0.000000e+00> : vector<8x32xf32>
    %165 = tpu.matmul %164, %163, %cst_50 {dimension_numbers = #tpu.dot_dimension_numbers<[1], [0], [0], [1], [0, 0, 1, 1], [], []>} : vector<8x8xf32>, vector<8x32xf32>, vector<8x32xf32> -> vector<8x32xf32>
    %166 = vector.extract_strided_slice %7 {offsets = [0, 10], sizes = [8, 1], strides = [1, 1]} : vector<8x12xf32> to vector<8x1xf32>
    %167 = vector.broadcast %166 : vector<8x1xf32> to vector<8x32xf32>
    %168 = arith.addf %165, %167 : vector<8x32xf32>
    %cst_51 = arith.constant 0.000000e+00 : f32
    %169 = vector.broadcast %cst_51 : f32 to vector<8x32xf32>
    %170 = arith.maximumf %168, %169 : vector<8x32xf32>
    %171 = arith.addf %125, %170 : vector<8x32xf32>
    %172 = vector.extract_strided_slice %1 {offsets = [2, 0], sizes = [8, 32], strides = [1, 1]} : vector<12x36xf32> to vector<8x32xf32>
    %173 = vector.extract_strided_slice %1 {offsets = [2, 1], sizes = [8, 32], strides = [1, 1]} : vector<12x36xf32> to vector<8x32xf32>
    %174 = vector.extract_strided_slice %1 {offsets = [2, 2], sizes = [8, 32], strides = [1, 1]} : vector<12x36xf32> to vector<8x32xf32>
    %175 = vector.extract_strided_slice %1 {offsets = [2, 3], sizes = [8, 32], strides = [1, 1]} : vector<12x36xf32> to vector<8x32xf32>
    %176 = vector.extract_strided_slice %1 {offsets = [2, 4], sizes = [8, 32], strides = [1, 1]} : vector<12x36xf32> to vector<8x32xf32>
    %177 = tpu.concatenate %172, %173, %174, %175, %176 in 0 : vector<8x32xf32>, vector<8x32xf32>, vector<8x32xf32>, vector<8x32xf32>, vector<8x32xf32> -> vector<40x32xf32>
    %178 = vector.extract_strided_slice %2 {offsets = [0, 32], sizes = [8, 40], strides = [1, 1]} : vector<8x72xf32> to vector<8x40xf32>
    %cst_52 = arith.constant dense<0.000000e+00> : vector<8x32xf32>
    %179 = tpu.matmul %178, %177, %cst_52 {dimension_numbers = #tpu.dot_dimension_numbers<[1], [0], [0], [1], [0, 0, 1, 1], [], []>} : vector<8x40xf32>, vector<40x32xf32>, vector<8x32xf32> -> vector<8x32xf32>
    %180 = vector.extract_strided_slice %7 {offsets = [0, 2], sizes = [8, 1], strides = [1, 1]} : vector<8x12xf32> to vector<8x1xf32>
    %181 = vector.broadcast %180 : vector<8x1xf32> to vector<8x32xf32>
    %182 = arith.addf %179, %181 : vector<8x32xf32>
    %cst_53 = arith.constant 0.000000e+00 : f32
    %183 = vector.broadcast %cst_53 : f32 to vector<8x32xf32>
    %184 = arith.maximumf %182, %183 : vector<8x32xf32>
    %cst_54 = arith.constant dense<0.000000e+00> : vector<8xf32>
    %185 = vector.multi_reduction <add>, %184, %cst_54 [1] : vector<8x32xf32> to vector<8xf32>
    %186 = vector.shape_cast %185 : vector<8xf32> to vector<8x1xf32>
    %cst_55 = arith.constant 3.200000e+01 : f32
    %187 = vector.broadcast %cst_55 : f32 to vector<8x1xf32>
    %188 = arith.divf %186, %187 : vector<8x1xf32>
    %189 = vector.broadcast %188 : vector<8x1xf32> to vector<8x32xf32>
    %190 = arith.subf %184, %189 : vector<8x32xf32>
    %191 = arith.mulf %190, %190 : vector<8x32xf32>
    %cst_56 = arith.constant dense<0.000000e+00> : vector<8xf32>
    %192 = vector.multi_reduction <add>, %191, %cst_56 [1] : vector<8x32xf32> to vector<8xf32>
    %193 = vector.shape_cast %192 : vector<8xf32> to vector<8x1xf32>
    %cst_57 = arith.constant 3.200000e+01 : f32
    %194 = vector.broadcast %cst_57 : f32 to vector<8x1xf32>
    %195 = arith.divf %193, %194 : vector<8x1xf32>
    %cst_58 = arith.constant 9.99999974E-6 : f32
    %196 = vector.broadcast %cst_58 : f32 to vector<8x1xf32>
    %197 = arith.addf %195, %196 : vector<8x1xf32>
    %198 = math.rsqrt %197 : vector<8x1xf32>
    %199 = vector.broadcast %198 : vector<8x1xf32> to vector<8x32xf32>
    %200 = arith.mulf %190, %199 : vector<8x32xf32>
    %201 = vector.extract_strided_slice %6 {offsets = [2, 0], sizes = [1, 32], strides = [1, 1]} : vector<14x32xf32> to vector<1x32xf32>
    %202 = vector.broadcast %201 : vector<1x32xf32> to vector<8x32xf32>
    %203 = arith.mulf %200, %202 : vector<8x32xf32>
    %204 = vector.extract_strided_slice %6 {offsets = [5, 0], sizes = [1, 32], strides = [1, 1]} : vector<14x32xf32> to vector<1x32xf32>
    %205 = vector.broadcast %204 : vector<1x32xf32> to vector<8x32xf32>
    %206 = arith.addf %203, %205 : vector<8x32xf32>
    %207 = vector.extract_strided_slice %4 {offsets = [64, 0], sizes = [32, 32], strides = [1, 1]} : vector<96x32xf32> to vector<32x32xf32>
    %cst_59 = arith.constant dense<0.000000e+00> : vector<8x32xf32>
    %208 = tpu.matmul %206, %207, %cst_59 {dimension_numbers = #tpu.dot_dimension_numbers<[1], [0], [0], [1], [0, 0, 1, 1], [], []>} : vector<8x32xf32>, vector<32x32xf32>, vector<8x32xf32> -> vector<8x32xf32>
    %209 = vector.extract_strided_slice %6 {offsets = [8, 0], sizes = [1, 32], strides = [1, 1]} : vector<14x32xf32> to vector<1x32xf32>
    %210 = vector.broadcast %209 : vector<1x32xf32> to vector<8x32xf32>
    %211 = arith.addf %208, %210 : vector<8x32xf32>
    %cst_60 = arith.constant 0.000000e+00 : f32
    %212 = vector.broadcast %cst_60 : f32 to vector<8x32xf32>
    %213 = arith.maximumf %211, %212 : vector<8x32xf32>
    %214 = arith.addf %171, %213 : vector<8x32xf32>
    %215 = vector.extract_strided_slice %1 {offsets = [0, 2], sizes = [8, 32], strides = [1, 1]} : vector<12x36xf32> to vector<8x32xf32>
    %216 = vector.extract_strided_slice %3 {offsets = [128, 0], sizes = [32, 32], strides = [1, 1]} : vector<288x32xf32> to vector<32x32xf32>
    %cst_61 = arith.constant dense<0.000000e+00> : vector<8x32xf32>
    %217 = tpu.matmul %215, %216, %cst_61 {dimension_numbers = #tpu.dot_dimension_numbers<[1], [0], [0], [1], [0, 0, 1, 1], [], []>} : vector<8x32xf32>, vector<32x32xf32>, vector<8x32xf32> -> vector<8x32xf32>
    %218 = vector.extract_strided_slice %1 {offsets = [1, 2], sizes = [8, 32], strides = [1, 1]} : vector<12x36xf32> to vector<8x32xf32>
    %219 = vector.extract_strided_slice %3 {offsets = [160, 0], sizes = [32, 32], strides = [1, 1]} : vector<288x32xf32> to vector<32x32xf32>
    %cst_62 = arith.constant dense<0.000000e+00> : vector<8x32xf32>
    %220 = tpu.matmul %218, %219, %cst_62 {dimension_numbers = #tpu.dot_dimension_numbers<[1], [0], [0], [1], [0, 0, 1, 1], [], []>} : vector<8x32xf32>, vector<32x32xf32>, vector<8x32xf32> -> vector<8x32xf32>
    %221 = arith.addf %217, %220 : vector<8x32xf32>
    %222 = vector.extract_strided_slice %1 {offsets = [2, 2], sizes = [8, 32], strides = [1, 1]} : vector<12x36xf32> to vector<8x32xf32>
    %223 = vector.extract_strided_slice %3 {offsets = [192, 0], sizes = [32, 32], strides = [1, 1]} : vector<288x32xf32> to vector<32x32xf32>
    %cst_63 = arith.constant dense<0.000000e+00> : vector<8x32xf32>
    %224 = tpu.matmul %222, %223, %cst_63 {dimension_numbers = #tpu.dot_dimension_numbers<[1], [0], [0], [1], [0, 0, 1, 1], [], []>} : vector<8x32xf32>, vector<32x32xf32>, vector<8x32xf32> -> vector<8x32xf32>
    %225 = arith.addf %221, %224 : vector<8x32xf32>
    %226 = vector.extract_strided_slice %1 {offsets = [3, 2], sizes = [8, 32], strides = [1, 1]} : vector<12x36xf32> to vector<8x32xf32>
    %227 = vector.extract_strided_slice %3 {offsets = [224, 0], sizes = [32, 32], strides = [1, 1]} : vector<288x32xf32> to vector<32x32xf32>
    %cst_64 = arith.constant dense<0.000000e+00> : vector<8x32xf32>
    %228 = tpu.matmul %226, %227, %cst_64 {dimension_numbers = #tpu.dot_dimension_numbers<[1], [0], [0], [1], [0, 0, 1, 1], [], []>} : vector<8x32xf32>, vector<32x32xf32>, vector<8x32xf32> -> vector<8x32xf32>
    %229 = arith.addf %225, %228 : vector<8x32xf32>
    %230 = vector.extract_strided_slice %1 {offsets = [4, 2], sizes = [8, 32], strides = [1, 1]} : vector<12x36xf32> to vector<8x32xf32>
    %231 = vector.extract_strided_slice %3 {offsets = [256, 0], sizes = [32, 32], strides = [1, 1]} : vector<288x32xf32> to vector<32x32xf32>
    %cst_65 = arith.constant dense<0.000000e+00> : vector<8x32xf32>
    %232 = tpu.matmul %230, %231, %cst_65 {dimension_numbers = #tpu.dot_dimension_numbers<[1], [0], [0], [1], [0, 0, 1, 1], [], []>} : vector<8x32xf32>, vector<32x32xf32>, vector<8x32xf32> -> vector<8x32xf32>
    %233 = arith.addf %229, %232 : vector<8x32xf32>
    %234 = vector.extract_strided_slice %6 {offsets = [11, 0], sizes = [1, 32], strides = [1, 1]} : vector<14x32xf32> to vector<1x32xf32>
    %235 = vector.broadcast %234 : vector<1x32xf32> to vector<8x32xf32>
    %236 = arith.addf %233, %235 : vector<8x32xf32>
    %cst_66 = arith.constant 0.000000e+00 : f32
    %237 = vector.broadcast %cst_66 : f32 to vector<8x32xf32>
    %238 = arith.maximumf %236, %237 : vector<8x32xf32>
    %cst_67 = arith.constant dense<0.000000e+00> : vector<32xf32>
    %239 = vector.multi_reduction <add>, %238, %cst_67 [0] : vector<8x32xf32> to vector<32xf32>
    %240 = vector.shape_cast %239 : vector<32xf32> to vector<1x32xf32>
    %cst_68 = arith.constant 8.000000e+00 : f32
    %241 = vector.broadcast %cst_68 : f32 to vector<1x32xf32>
    %242 = arith.divf %240, %241 : vector<1x32xf32>
    %243 = vector.broadcast %242 : vector<1x32xf32> to vector<8x32xf32>
    %244 = arith.subf %238, %243 : vector<8x32xf32>
    %245 = arith.mulf %244, %244 : vector<8x32xf32>
    %cst_69 = arith.constant dense<0.000000e+00> : vector<32xf32>
    %246 = vector.multi_reduction <add>, %245, %cst_69 [0] : vector<8x32xf32> to vector<32xf32>
    %247 = vector.shape_cast %246 : vector<32xf32> to vector<1x32xf32>
    %cst_70 = arith.constant 8.000000e+00 : f32
    %248 = vector.broadcast %cst_70 : f32 to vector<1x32xf32>
    %249 = arith.divf %247, %248 : vector<1x32xf32>
    %cst_71 = arith.constant 9.99999974E-6 : f32
    %250 = vector.broadcast %cst_71 : f32 to vector<1x32xf32>
    %251 = arith.addf %249, %250 : vector<1x32xf32>
    %252 = math.rsqrt %251 : vector<1x32xf32>
    %253 = vector.broadcast %252 : vector<1x32xf32> to vector<8x32xf32>
    %254 = arith.mulf %244, %253 : vector<8x32xf32>
    %255 = vector.extract_strided_slice %7 {offsets = [0, 5], sizes = [8, 1], strides = [1, 1]} : vector<8x12xf32> to vector<8x1xf32>
    %256 = vector.broadcast %255 : vector<8x1xf32> to vector<8x32xf32>
    %257 = arith.mulf %254, %256 : vector<8x32xf32>
    %258 = vector.extract_strided_slice %7 {offsets = [0, 8], sizes = [8, 1], strides = [1, 1]} : vector<8x12xf32> to vector<8x1xf32>
    %259 = vector.broadcast %258 : vector<8x1xf32> to vector<8x32xf32>
    %260 = arith.addf %257, %259 : vector<8x32xf32>
    %261 = vector.extract_strided_slice %5 {offsets = [16, 0], sizes = [8, 8], strides = [1, 1]} : vector<24x8xf32> to vector<8x8xf32>
    %cst_72 = arith.constant dense<0.000000e+00> : vector<8x32xf32>
    %262 = tpu.matmul %261, %260, %cst_72 {dimension_numbers = #tpu.dot_dimension_numbers<[1], [0], [0], [1], [0, 0, 1, 1], [], []>} : vector<8x8xf32>, vector<8x32xf32>, vector<8x32xf32> -> vector<8x32xf32>
    %263 = vector.extract_strided_slice %7 {offsets = [0, 11], sizes = [8, 1], strides = [1, 1]} : vector<8x12xf32> to vector<8x1xf32>
    %264 = vector.broadcast %263 : vector<8x1xf32> to vector<8x32xf32>
    %265 = arith.addf %262, %264 : vector<8x32xf32>
    %cst_73 = arith.constant 0.000000e+00 : f32
    %266 = vector.broadcast %cst_73 : f32 to vector<8x32xf32>
    %267 = arith.maximumf %265, %266 : vector<8x32xf32>
    %268 = arith.addf %214, %267 : vector<8x32xf32>
    %cst_74 = arith.constant dense<0.000000e+00> : vector<8xf32>
    %269 = vector.multi_reduction <add>, %268, %cst_74 [1] : vector<8x32xf32> to vector<8xf32>
    %270 = vector.shape_cast %269 : vector<8xf32> to vector<8x1xf32>
    %cst_75 = arith.constant 3.200000e+01 : f32
    %271 = vector.broadcast %cst_75 : f32 to vector<8x1xf32>
    %272 = arith.divf %270, %271 : vector<8x1xf32>
    %273 = vector.broadcast %272 : vector<8x1xf32> to vector<8x32xf32>
    %274 = arith.subf %268, %273 : vector<8x32xf32>
    %275 = arith.mulf %274, %274 : vector<8x32xf32>
    %cst_76 = arith.constant dense<0.000000e+00> : vector<8xf32>
    %276 = vector.multi_reduction <add>, %275, %cst_76 [1] : vector<8x32xf32> to vector<8xf32>
    %277 = vector.shape_cast %276 : vector<8xf32> to vector<8x1xf32>
    %cst_77 = arith.constant 3.100000e+01 : f32
    %278 = vector.broadcast %cst_77 : f32 to vector<8x1xf32>
    %279 = arith.divf %277, %278 : vector<8x1xf32>
    %280 = math.sqrt %279 : vector<8x1xf32>
    %cst_78 = arith.constant 9.99999997E-7 : f32
    %281 = vector.broadcast %cst_78 : f32 to vector<8x1xf32>
    %282 = arith.addf %280, %281 : vector<8x1xf32>
    %283 = tpu.reciprocal %282 : vector<8x1xf32> -> vector<8x1xf32>
    %284 = vector.extract_strided_slice %6 {offsets = [12, 0], sizes = [1, 32], strides = [1, 1]} : vector<14x32xf32> to vector<1x32xf32>
    %285 = vector.broadcast %284 : vector<1x32xf32> to vector<8x32xf32>
    %286 = arith.mulf %285, %274 : vector<8x32xf32>
    %287 = vector.broadcast %283 : vector<8x1xf32> to vector<8x32xf32>
    %288 = arith.mulf %286, %287 : vector<8x32xf32>
    %289 = vector.extract_strided_slice %6 {offsets = [13, 0], sizes = [1, 32], strides = [1, 1]} : vector<14x32xf32> to vector<1x32xf32>
    %290 = vector.broadcast %289 : vector<1x32xf32> to vector<8x32xf32>
    %291 = arith.addf %288, %290 : vector<8x32xf32>
    %c0_79 = arith.constant 0 : index
    %c0_80 = arith.constant 0 : index
    %c0_81 = arith.constant 0 : index
    %292 = vector.load %arg8[%c0_79, %c0_80, %c0_81] : memref<1x8x32xf32, #tpu.memory_space<vmem>>, vector<1x8x32xf32>
    %293 = vector.shape_cast %292 : vector<1x8x32xf32> to vector<8x32xf32>
    %294 = vector.shape_cast %291 : vector<8x32xf32> to vector<1x8x32xf32>
    tpu.vector_store %arg8[%c0_79, %c0_80, %c0_81], %294 {strides = array<i32>} : memref<1x8x32xf32, #tpu.memory_space<vmem>>, vector<1x8x32xf32>,
    return
  }
  func.func @transform_0(%arg0: i32) -> (i32, i32, i32) {
    %c0_i32 = arith.constant 0 : i32
    %c0_i32_0 = arith.constant 0 : i32
    %c0_i32_1 = arith.constant 0 : i32
    return %arg0, %c0_i32, %c0_i32_0 : i32, i32, i32
  }
  func.func @transform_1(%arg0: i32) -> (i32, i32) {
    %c0_i32 = arith.constant 0 : i32
    %c0_i32_0 = arith.constant 0 : i32
    %c0_i32_1 = arith.constant 0 : i32
    return %c0_i32, %c0_i32_0 : i32, i32
  }
  func.func @transform_2(%arg0: i32) -> (i32, i32) {
    %c0_i32 = arith.constant 0 : i32
    %c0_i32_0 = arith.constant 0 : i32
    %c0_i32_1 = arith.constant 0 : i32
    return %c0_i32, %c0_i32_0 : i32, i32
  }
  func.func @transform_3(%arg0: i32) -> (i32, i32) {
    %c0_i32 = arith.constant 0 : i32
    %c0_i32_0 = arith.constant 0 : i32
    %c0_i32_1 = arith.constant 0 : i32
    return %c0_i32, %c0_i32_0 : i32, i32
  }
  func.func @transform_4(%arg0: i32) -> (i32, i32) {
    %c0_i32 = arith.constant 0 : i32
    %c0_i32_0 = arith.constant 0 : i32
    %c0_i32_1 = arith.constant 0 : i32
    return %c0_i32, %c0_i32_0 : i32, i32
  }
  func.func @transform_5(%arg0: i32) -> (i32, i32) {
    %c0_i32 = arith.constant 0 : i32
    %c0_i32_0 = arith.constant 0 : i32
    %c0_i32_1 = arith.constant 0 : i32
    return %c0_i32, %c0_i32_0 : i32, i32
  }
  func.func @transform_6(%arg0: i32) -> (i32, i32) {
    %c0_i32 = arith.constant 0 : i32
    %c0_i32_0 = arith.constant 0 : i32
    %c0_i32_1 = arith.constant 0 : i32
    return %c0_i32, %c0_i32_0 : i32, i32
  }
  func.func @transform_7(%arg0: i32) -> (i32, i32, i32) {
    %c0_i32 = arith.constant 0 : i32
    %c0_i32_0 = arith.constant 0 : i32
    %c0_i32_1 = arith.constant 0 : i32
    return %arg0, %c0_i32, %c0_i32_0 : i32, i32, i32
  }
}

</mosaic_0001>

<llo_original>
// kernel: multi_transformer_layer.1
$region0: #{multi_transformer_layer.1}
  #allocation0 [shape = 'u32[]', space=smem, size = 0x4, offset = 0x4, fixed_abs, tag = 'smem constant byte address 0x4 - core index']
  #allocation1 [shape = 'u32[144,128]{1,0:T(1,128)}', space=vmem, size = 0x12000, scoped, tag = 'internal scratch']
  %s0 = inlined_call_operand.vmem [shape: f32[2,12,36], index: 0, kind: input, shape index: {}]
  %s1 = inlined_call_operand.vmem [shape: f32[8,72], index: 1, kind: input, shape index: {}]
  %s2 = inlined_call_operand.vmem [shape: f32[288,32], index: 2, kind: input, shape index: {}]
  %s3 = inlined_call_operand.vmem [shape: f32[96,32], index: 3, kind: input, shape index: {}]
  %s4 = inlined_call_operand.vmem [shape: f32[24,8], index: 4, kind: input, shape index: {}]
  %s5 = inlined_call_operand.vmem [shape: f32[14,32], index: 5, kind: input, shape index: {}]
  %s6 = inlined_call_operand.vmem [shape: f32[8,12], index: 6, kind: input, shape index: {}]
  %s7 = inlined_call_operand.hbm [shape: f32[2,8,32], index: 7, kind: output, shape index: {}]
  %s8 = sld [smem:[#allocation0]]
  $region61: #{multi_transformer_layer.1} parent=0
    _
  %s10 = ssub.s32 1, %s8
  %s11 = scalar_select 0, %s10, %s8
  $region1: #{multi_transformer_layer.1} parent=0
    #allocation2 [shape = 'u8[8192]{0}', space=vmem, size = 0x2000, scoped, tag = 'output window, operand 0']
    #allocation3 [shape = 's32[2]{0}', space=sflag, size = 0x8, scoped, tag = 'scoped memory for multi_transformer_layer.1']
    %12 = vsyncpa [#allocation3], 0
    %s13 = scalar_lea.sflag [#allocation3], 1
    %14 = vsyncpa %s13, 0
    loop: start=0, step=1, limit=4
    $region2: #{multi_transformer_layer.1} parent=1 // loop_pre_header
      _
    $region3: #{multi_transformer_layer.1} parent=1 // loop_header
      %s16 = sphi 0, %s20
      %p17 = scmp.ge.s32.totalorder %s16, 4
      %s26 = sphi 0, %s28
      %s29 = sphi 0, %s26
      %s30 = sphi 0, %s29
      %s46 = sphi 0, %s30
      %s50 = sphi 0, %s50
      %s52 = sphi 0, %s50
      %s53 = sphi 0, %s52
      %s67 = sphi 0, %s53
      %s71 = sphi 0, %s71
      %s73 = sphi 0, %s71
      %s74 = sphi 0, %s73
      %s88 = sphi 0, %s74
      %s92 = sphi 0, %s92
      %s94 = sphi 0, %s92
      %s95 = sphi 0, %s94
      %s109 = sphi 0, %s95
      %s113 = sphi 0, %s113
      %s115 = sphi 0, %s113
      %s116 = sphi 0, %s115
      %s130 = sphi 0, %s116
      %s134 = sphi 0, %s134
      %s136 = sphi 0, %s134
      %s137 = sphi 0, %s136
      %s151 = sphi 0, %s137
      %s155 = sphi 0, %s155
      %s157 = sphi 0, %s155
      %s158 = sphi 0, %s157
      %s172 = sphi 0, %s158
      %s178 = sphi 0, %s180
      %s181 = sphi 0, %s178
      %s182 = sphi 0, %s181
      %s198 = sphi 0, %s182
    $region4: #{multi_transformer_layer.1} parent=1 // loop_header_branch
      %19 = sbr.rel (%p17) target = $region8
    $region5: #{multi_transformer_layer.1} parent=1 // loop_body
      %s21 = ssub.s32 %s16, 1
      %s22 = ssub.s32 %s16, 2
      %s23 = sadd.s32 %s16, 1
      %s24 = ssub.s32 %s16, %s23
      %p25 = scmp.eq.s32.totalorder %s24, 0
      %s27 = sadd.s32 %s26, 1
      %s28 = scalar_select %p25, %s26, %s27
      %p31 = pneg %p25
      %p32 = scmp.eq.s32.totalorder %s16, 1
      %p33 = por %p31, %p32
      %p34 = scmp.ne.s32.totalorder %s26, %s29
      %p35 = scmp.eq.s32.totalorder %s16, 0
      %p36 = por %p34, %p35
      %p37 = scmp.ne.s32.totalorder %s26, %s29
      %p38 = scmp.eq.s32.totalorder %s21, 1
      %p39 = por %p37, %p38
      %p40 = scmp.ne.s32.totalorder %s29, %s30
      %p41 = scmp.eq.s32.totalorder %s21, 0
      %p42 = por %p40, %p41
      %p43 = scmp.ne.s32.totalorder %s29, %s30
      %p44 = scmp.eq.s32.totalorder %s22, 1
      %p45 = por %p43, %p44
      %p47 = scmp.ne.s32.totalorder %s30, %s46
      %p48 = scmp.eq.s32.totalorder %s22, 0
      %p49 = por %p47, %p48
      %s51 = sadd.s32 %s50, 1
      %p54 = scmp.eq.s32.totalorder %s16, 1
      %p55 = scmp.ne.s32.totalorder %s50, %s52
      %p56 = scmp.eq.s32.totalorder %s16, 0
      %p57 = por %p55, %p56
      %p58 = scmp.ne.s32.totalorder %s50, %s52
      %p59 = scmp.eq.s32.totalorder %s21, 1
      %p60 = por %p58, %p59
      %p61 = scmp.ne.s32.totalorder %s52, %s53
      %p62 = scmp.eq.s32.totalorder %s21, 0
      %p63 = por %p61, %p62
      %p64 = scmp.ne.s32.totalorder %s52, %s53
      %p65 = scmp.eq.s32.totalorder %s22, 1
      %p66 = por %p64, %p65
      %p68 = scmp.ne.s32.totalorder %s53, %s67
      %p69 = scmp.eq.s32.totalorder %s22, 0
      %p70 = por %p68, %p69
      %s72 = sadd.s32 %s71, 1
      %p75 = scmp.eq.s32.totalorder %s16, 1
      %p76 = scmp.ne.s32.totalorder %s71, %s73
      %p77 = scmp.eq.s32.totalorder %s16, 0
      %p78 = por %p76, %p77
      %p79 = scmp.ne.s32.totalorder %s71, %s73
      %p80 = scmp.eq.s32.totalorder %s21, 1
      %p81 = por %p79, %p80
      %p82 = scmp.ne.s32.totalorder %s73, %s74
      %p83 = scmp.eq.s32.totalorder %s21, 0
      %p84 = por %p82, %p83
      %p85 = scmp.ne.s32.totalorder %s73, %s74
      %p86 = scmp.eq.s32.totalorder %s22, 1
      %p87 = por %p85, %p86
      %p89 = scmp.ne.s32.totalorder %s74, %s88
      %p90 = scmp.eq.s32.totalorder %s22, 0
      %p91 = por %p89, %p90
      %s93 = sadd.s32 %s92, 1
      %p96 = scmp.eq.s32.totalorder %s16, 1
      %p97 = scmp.ne.s32.totalorder %s92, %s94
      %p98 = scmp.eq.s32.totalorder %s16, 0
      %p99 = por %p97, %p98
      %p100 = scmp.ne.s32.totalorder %s92, %s94
      %p101 = scmp.eq.s32.totalorder %s21, 1
      %p102 = por %p100, %p101
      %p103 = scmp.ne.s32.totalorder %s94, %s95
      %p104 = scmp.eq.s32.totalorder %s21, 0
      %p105 = por %p103, %p104
      %p106 = scmp.ne.s32.totalorder %s94, %s95
      %p107 = scmp.eq.s32.totalorder %s22, 1
      %p108 = por %p106, %p107
      %p110 = scmp.ne.s32.totalorder %s95, %s109
      %p111 = scmp.eq.s32.totalorder %s22, 0
      %p112 = por %p110, %p111
      %s114 = sadd.s32 %s113, 1
      %p117 = scmp.eq.s32.totalorder %s16, 1
      %p118 = scmp.ne.s32.totalorder %s113, %s115
      %p119 = scmp.eq.s32.totalorder %s16, 0
      %p120 = por %p118, %p119
      %p121 = scmp.ne.s32.totalorder %s113, %s115
      %p122 = scmp.eq.s32.totalorder %s21, 1
      %p123 = por %p121, %p122
      %p124 = scmp.ne.s32.totalorder %s115, %s116
      %p125 = scmp.eq.s32.totalorder %s21, 0
      %p126 = por %p124, %p125
      %p127 = scmp.ne.s32.totalorder %s115, %s116
      %p128 = scmp.eq.s32.totalorder %s22, 1
      %p129 = por %p127, %p128
      %p131 = scmp.ne.s32.totalorder %s116, %s130
      %p132 = scmp.eq.s32.totalorder %s22, 0
      %p133 = por %p131, %p132
      %s135 = sadd.s32 %s134, 1
      %p138 = scmp.eq.s32.totalorder %s16, 1
      %p139 = scmp.ne.s32.totalorder %s134, %s136
      %p140 = scmp.eq.s32.totalorder %s16, 0
      %p141 = por %p139, %p140
      %p142 = scmp.ne.s32.totalorder %s134, %s136
      %p143 = scmp.eq.s32.totalorder %s21, 1
      %p144 = por %p142, %p143
      %p145 = scmp.ne.s32.totalorder %s136, %s137
      %p146 = scmp.eq.s32.totalorder %s21, 0
      %p147 = por %p145, %p146
      %p148 = scmp.ne.s32.totalorder %s136, %s137
      %p149 = scmp.eq.s32.totalorder %s22, 1
      %p150 = por %p148, %p149
      %p152 = scmp.ne.s32.totalorder %s137, %s151
      %p153 = scmp.eq.s32.totalorder %s22, 0
      %p154 = por %p152, %p153
      %s156 = sadd.s32 %s155, 1
      %p159 = scmp.eq.s32.totalorder %s16, 1
      %p160 = scmp.ne.s32.totalorder %s155, %s157
      %p161 = scmp.eq.s32.totalorder %s16, 0
      %p162 = por %p160, %p161
      %p163 = scmp.ne.s32.totalorder %s155, %s157
      %p164 = scmp.eq.s32.totalorder %s21, 1
      %p165 = por %p163, %p164
      %p166 = scmp.ne.s32.totalorder %s157, %s158
      %p167 = scmp.eq.s32.totalorder %s21, 0
      %p168 = por %p166, %p167
      %p169 = scmp.ne.s32.totalorder %s157, %s158
      %p170 = scmp.eq.s32.totalorder %s22, 1
      %p171 = por %p169, %p170
      %p173 = scmp.ne.s32.totalorder %s158, %s172
      %p174 = scmp.eq.s32.totalorder %s22, 0
      %p175 = por %p173, %p174
      %s176 = ssub.s32 %s16, %s23
      %p177 = scmp.eq.s32.totalorder %s176, 0
      %s179 = sadd.s32 %s178, 1
      %s180 = scalar_select %p177, %s178, %s179
      %p183 = pneg %p177
      %p184 = scmp.eq.s32.totalorder %s16, 1
      %p185 = por %p183, %p184
      %p186 = scmp.ne.s32.totalorder %s178, %s181
      %p187 = scmp.eq.s32.totalorder %s16, 0
      %p188 = por %p186, %p187
      %p189 = scmp.ne.s32.totalorder %s178, %s181
      %p190 = scmp.eq.s32.totalorder %s21, 1
      %p191 = por %p189, %p190
      %p192 = scmp.ne.s32.totalorder %s181, %s182
      %p193 = scmp.eq.s32.totalorder %s21, 0
      %p194 = por %p192, %p193
      %p195 = scmp.ne.s32.totalorder %s181, %s182
      %p196 = scmp.eq.s32.totalorder %s22, 1
      %p197 = por %p195, %p196
      %p199 = scmp.ne.s32.totalorder %s182, %s198
      %p200 = scmp.eq.s32.totalorder %s22, 0
      %p201 = por %p199, %p200
      %p202 = scmp.le.s32.totalorder 1, %s16
      %p203 = scmp.lt.s32.totalorder %s16, 3
      %p204 = pnand %p202, %p203
      %p205 = pneg %p204
      // Predicated region
      $region9: #{multi_transformer_layer.1} parent=5 // pred_check
        _
      $region10: #{multi_transformer_layer.1} parent=5 // pred_check_branch
        %207 = sbr.rel (%p204) target = $region12
      $region11: #{multi_transformer_layer.1} parent=5 // pred_region
        %s208 = ssub.s32 %s16, 1
        // Predicated region
        $region13: #{multi_transformer_layer.1} parent=11 // pred_check
          %p209 = pneg %p63
        $region14: #{multi_transformer_layer.1} parent=11 // pred_check_branch
          %211 = sbr.rel (%p209) target = $region16
        $region15: #{multi_transformer_layer.1} parent=11 // pred_region
          _
        $region16: #{multi_transformer_layer.1} parent=11 // pred_fallthru
          _
        // Predicated region
        $region17: #{multi_transformer_layer.1} parent=11 // pred_check
          %p212 = pneg %p84
        $region18: #{multi_transformer_layer.1} parent=11 // pred_check_branch
          %214 = sbr.rel (%p212) target = $region20
        $region19: #{multi_transformer_layer.1} parent=11 // pred_region
          _
        $region20: #{multi_transformer_layer.1} parent=11 // pred_fallthru
          _
        // Predicated region
        $region21: #{multi_transformer_layer.1} parent=11 // pred_check
          %p215 = pneg %p105
        $region22: #{multi_transformer_layer.1} parent=11 // pred_check_branch
          %217 = sbr.rel (%p215) target = $region24
        $region23: #{multi_transformer_layer.1} parent=11 // pred_region
          _
        $region24: #{multi_transformer_layer.1} parent=11 // pred_fallthru
          _
        // Predicated region
        $region25: #{multi_transformer_layer.1} parent=11 // pred_check
          %p218 = pneg %p126
        $region26: #{multi_transformer_layer.1} parent=11 // pred_check_branch
          %220 = sbr.rel (%p218) target = $region28
        $region27: #{multi_transformer_layer.1} parent=11 // pred_region
          _
        $region28: #{multi_transformer_layer.1} parent=11 // pred_fallthru
          _
        // Predicated region
        $region29: #{multi_transformer_layer.1} parent=11 // pred_check
          %p221 = pneg %p147
        $region30: #{multi_transformer_layer.1} parent=11 // pred_check_branch
          %223 = sbr.rel (%p221) target = $region32
        $region31: #{multi_transformer_layer.1} parent=11 // pred_region
          _
        $region32: #{multi_transformer_layer.1} parent=11 // pred_fallthru
          _
        // Predicated region
        $region33: #{multi_transformer_layer.1} parent=11 // pred_check
          %p224 = pneg %p168
        $region34: #{multi_transformer_layer.1} parent=11 // pred_check_branch
          %226 = sbr.rel (%p224) target = $region36
        $region35: #{multi_transformer_layer.1} parent=11 // pred_region
          _
        $region36: #{multi_transformer_layer.1} parent=11 // pred_fallthru
          _
      $region12: #{multi_transformer_layer.1} parent=5 // pred_fallthru
        _
      %p227 = scmp.lt.s32.totalorder %s16, 2
      // Predicated region
      $region37: #{multi_transformer_layer.1} parent=5 // pred_check
        %p228 = pneg %p227
      $region38: #{multi_transformer_layer.1} parent=5 // pred_check_branch
        %230 = sbr.rel (%p228) target = $region40
      $region39: #{multi_transformer_layer.1} parent=5 // pred_region
        // Predicated region
        $region41: #{multi_transformer_layer.1} parent=39 // pred_check
          %p231 = pneg %p36
        $region42: #{multi_transformer_layer.1} parent=39 // pred_check_branch
          %233 = sbr.rel (%p231) target = $region44
        $region43: #{multi_transformer_layer.1} parent=39 // pred_region
          %p234 = scmp.lt.s32.totalorder %s16, 1
          %s235 = scalar_select %p234, %s16, 1
          %s236 = smul.addr %s235, 2
          %s237 = smul.addr %s236, 8
          %s238 = scalar_lea.vmem %s0, %s237
        $region44: #{multi_transformer_layer.1} parent=39 // pred_fallthru
          _
      $region40: #{multi_transformer_layer.1} parent=5 // pred_fallthru
        _
      %p239 = scmp.le.s32.totalorder 1, %s16
      %p240 = scmp.lt.s32.totalorder %s16, 3
      %p241 = pnand %p239, %p240
      %p242 = pneg %p241
      // Predicated region
      $region45: #{multi_transformer_layer.1} parent=5 // pred_check
        _
      $region46: #{multi_transformer_layer.1} parent=5 // pred_check_branch
        %244 = sbr.rel (%p241) target = $region48
      $region47: #{multi_transformer_layer.1} parent=5 // pred_region
        %s245 = ssub.s32 %s16, 1
        %p246 = scmp.lt.s32.totalorder %s21, 1
        %s247 = scalar_select %p246, %s21, 1
        %s248 = smul.addr %s247, 2
        %s249 = smul.addr %s248, 8
        %s250 = scalar_lea.vmem %s0, %s249
        %p251 = pneg %p42
        %p252 = pneg %p39
        %p253 = pneg %p63
        %p254 = pneg %p60
        %p255 = pneg %p84
        %p256 = pneg %p81
        %p257 = pneg %p105
        %p258 = pneg %p102
        %p259 = pneg %p126
        %p260 = pneg %p123
        %p261 = pneg %p147
        %p262 = pneg %p144
        %p263 = pneg %p168
        %p264 = pneg %p165
        %p265 = pneg %p194
        %p266 = pneg %p191
        %s267 = sand.u32 %s181, 1
        %s268 = scalar_lea.sflag [#allocation3], %s267
        %s269 = sand.u32 %s181, 1
        %s270 = smul.addr %s269, 8
        %s271 = scalar_lea.vmem [#allocation2], %s270
        %p272 = scmp.lt.s32.totalorder %s21, 1
        %s273 = scalar_select %p272, %s21, 1
        %s274 = smul.addr %s273, 2
        %s275 = smul.addr %s274, 8
        %s276 = scalar_lea.vmem %s0, %s275
        %v277 = vld [vmem:[%s276] sm:$0xff]
        %v278 = vld [vmem:[%s276 + $0x8] sm:$0xf]
        %v279 = vld [vmem:[%s1] sm:$0xff]
        %v280 = vld [vmem:[%s2] sm:$0xff]
        %v281 = vld [vmem:[%s2 + $0x8] sm:$0xff]
        %v282 = vld [vmem:[%s2 + $0x10] sm:$0xff]
        %v283 = vld [vmem:[%s2 + $0x18] sm:$0xff]
        %v284 = vld [vmem:[%s2 + $0x20] sm:$0xff]
        %v285 = vld [vmem:[%s2 + $0x28] sm:$0xff]
        %v286 = vld [vmem:[%s2 + $0x30] sm:$0xff]
        %v287 = vld [vmem:[%s2 + $0x38] sm:$0xff]
        %v288 = vld [vmem:[%s2 + $0x40] sm:$0xff]
        %v289 = vld [vmem:[%s2 + $0x48] sm:$0xff]
        %v290 = vld [vmem:[%s2 + $0x50] sm:$0xff]
        %v291 = vld [vmem:[%s2 + $0x58] sm:$0xff]
        %v292 = vld [vmem:[%s2 + $0x60] sm:$0xff]
        %v293 = vld [vmem:[%s2 + $0x68] sm:$0xff]
        %v294 = vld [vmem:[%s2 + $0x70] sm:$0xff]
        %v295 = vld [vmem:[%s2 + $0x78] sm:$0xff]
        %v296 = vld [vmem:[%s2 + $0x80] sm:$0xff]
        %v297 = vld [vmem:[%s2 + $0x88] sm:$0xff]
        %v298 = vld [vmem:[%s2 + $0x90] sm:$0xff]
        %v299 = vld [vmem:[%s2 + $0x98] sm:$0xff]
        %v300 = vld [vmem:[%s2 + $0xa0] sm:$0xff]
        %v301 = vld [vmem:[%s2 + $0xa8] sm:$0xff]
        %v302 = vld [vmem:[%s2 + $0xb0] sm:$0xff]
        %v303 = vld [vmem:[%s2 + $0xb8] sm:$0xff]
        %v304 = vld [vmem:[%s2 + $0xc0] sm:$0xff]
        %v305 = vld [vmem:[%s2 + $0xc8] sm:$0xff]
        %v306 = vld [vmem:[%s2 + $0xd0] sm:$0xff]
        %v307 = vld [vmem:[%s2 + $0xd8] sm:$0xff]
        %v308 = vld [vmem:[%s2 + $0xe0] sm:$0xff]
        %v309 = vld [vmem:[%s2 + $0xe8] sm:$0xff]
        %v310 = vld [vmem:[%s2 + $0xf0] sm:$0xff]
        %v311 = vld [vmem:[%s2 + $0xf8] sm:$0xff]
        %v312 = vld [vmem:[%s2 + $0x100] sm:$0xff]
        %v313 = vld [vmem:[%s2 + $0x108] sm:$0xff]
        %v314 = vld [vmem:[%s2 + $0x110] sm:$0xff]
        %v315 = vld [vmem:[%s2 + $0x118] sm:$0xff]
        %v316 = vld [vmem:[%s3] sm:$0xff]
        %v317 = vld [vmem:[%s3 + $0x8] sm:$0xff]
        %v318 = vld [vmem:[%s3 + $0x10] sm:$0xff]
        %v319 = vld [vmem:[%s3 + $0x18] sm:$0xff]
        %v320 = vld [vmem:[%s3 + $0x20] sm:$0xff]
        %v321 = vld [vmem:[%s3 + $0x28] sm:$0xff]
        %v322 = vld [vmem:[%s3 + $0x30] sm:$0xff]
        %v323 = vld [vmem:[%s3 + $0x38] sm:$0xff]
        %v324 = vld [vmem:[%s3 + $0x40] sm:$0xff]
        %v325 = vld [vmem:[%s3 + $0x48] sm:$0xff]
        %v326 = vld [vmem:[%s3 + $0x50] sm:$0xff]
        %v327 = vld [vmem:[%s3 + $0x58] sm:$0xff]
        %v328 = vld [vmem:[%s4] sm:$0xff]
        %v329 = vld [vmem:[%s4 + $0x8] sm:$0xff]
        %v330 = vld [vmem:[%s4 + $0x10] sm:$0xff]
        %v331 = vld [vmem:[%s5] sm:$0xff]
        %v332 = vld [vmem:[%s5 + $0x8] sm:$0x3f]
        %v333 = vld [vmem:[%s6] sm:$0xff]
        %335 = vset.pattern.permute.xlu0 0
        %336 = vperm.xlu0 %335, %v333
        %v337 = vpop.permute.xlu0 %336
        %vm341 = vcmask 1045504
        %v342 = vrot.slane %v277, 2
        %v343 = vrot.slane %v278, 2
        %v344 = vsel %vm341, %v342, %v343
        %345 = vrot.lane.b32.xlu0 %v344, 126
        %v346 = vpop.permute.xlu0 %345
        %vm348 = vcmask 64512
        %v350 = vsel %vm348, %v279, 0
        %352 = vmatprep.subr.mxu0 0.0
        %353 = vmatpush1.msra.mxu0 %v346
        %354 = vmatprep.subr.mxu0 0.0
        %355 = vmatpush1.msra.mxu0 0.0
        %356 = vmatprep.subr.mxu0 0.0
        %357 = vmatpush1.msra.mxu0 0.0
        %358 = vmatprep.subr.mxu0 0.0
        %359 = vmatpush1.msra.mxu0 0.0
        %360 = vmatprep.subr.mxu0 0.0
        %361 = vmatpush1.msra.mxu0 0.0
        %362 = vmatprep.subr.mxu0 0.0
        %363 = vmatpush1.msra.mxu0 0.0
        %364 = vmatprep.subr.mxu0 0.0
        %365 = vmatpush1.msra.mxu0 0.0
        %366 = vmatprep.subr.mxu0 0.0
        %367 = vmatpush1.msra.mxu0 0.0
        %368 = vmatprep.subr.mxu0 0.0
        %369 = vmatpush1.msra.mxu0 0.0
        %370 = vmatprep.subr.mxu0 0.0
        %371 = vmatpush1.msra.mxu0 0.0
        %372 = vmatprep.subr.mxu0 0.0
        %373 = vmatpush1.msra.mxu0 0.0
        %374 = vmatprep.subr.mxu0 0.0
        %375 = vmatpush1.msra.mxu0 0.0
        %376 = vmatprep.subr.mxu0 0.0
        %377 = vmatpush1.msra.mxu0 0.0
        %378 = vmatprep.subr.mxu0 0.0
        %379 = vmatpush1.msra.mxu0 0.0
        %380 = vmatprep.subr.mxu0 0.0
        %381 = vmatpush1.msra.mxu0 0.0
        %382 = vmatprep.subr.mxu0 0.0
        %383 = vmatpush1.msra.mxu0 0.0
        %384 = vmatprep.subr.mxu0 0.0
        %385 = vmatpush1.msra.mxu0 0.0
        %386 = vmatprep.subr.mxu0 0.0
        %387 = vmatpush1.msra.mxu0 0.0
        %388 = vmatprep.subr.mxu0 0.0
        %389 = vmatpush1.msra.mxu0 0.0
        %390 = vmatprep.subr.mxu0 0.0
        %391 = vmatpush1.msra.mxu0 0.0
        %392 = vmatprep.subr.mxu0 0.0
        %393 = vmatpush1.msra.mxu0 0.0
        %394 = vmatprep.subr.mxu0 0.0
        %395 = vmatpush1.msra.mxu0 0.0
        %396 = vmatprep.subr.mxu0 0.0
        %397 = vmatpush1.msra.mxu0 0.0
        %398 = vmatprep.subr.mxu0 0.0
        %399 = vmatpush1.msra.mxu0 0.0
        %400 = vmatprep.subr.mxu0 0.0
        %401 = vmatpush1.msra.mxu0 0.0
        %402 = vmatprep.subr.mxu0 0.0
        %403 = vmatpush1.msra.mxu0 0.0
        %404 = vmatprep.subr.mxu0 0.0
        %405 = vmatpush1.msra.mxu0 0.0
        %406 = vmatprep.subr.mxu0 0.0
        %407 = vmatpush1.msra.mxu0 0.0
        %408 = vmatprep.subr.mxu0 0.0
        %409 = vmatpush1.msra.mxu0 0.0
        %410 = vmatprep.subr.mxu0 0.0
        %411 = vmatpush1.msra.mxu0 0.0
        %412 = vmatprep.subr.mxu0 0.0
        %413 = vmatpush1.msra.mxu0 0.0
        %414 = vmatprep.subr.mxu0 0.0
        %415 = vmatpush1.msra.mxu0 0.0
        %416 = vmatprep.mubr.f32.mxu0 0.0
        %417 = vmatmul.mubr.f32.gmra.mrb[0].mxu0 %v350
        %v418 = vpop.f32.mrb[0].mxu0
        %v419 = vadd.f32 %v337, %v418
        %v420 = vpop.f32.mrb[0].mxu0
        %421 = vdwg.mxu0
        %v422 = vmax.f32 %v419, 0.0
        %vm423 = vcmask 261120
        %v424 = vsel %vm423, %v422, 0.0
        %425 = vadd.xlane.f32.xlu0 %v424
        %v426 = vpop.xlane.xlu0 %425
        %v427 = vrcp.pop 32.0
        %v428 = vmul.f32 %v426, %v427
        %v429 = vsub.f32 %v422, %v428
        %v430 = vmul.f32 %v429, %v429
        %v431 = vsel %vm423, %v430, 0.0
        %432 = vadd.xlane.f32.xlu0 %v431
        %v433 = vpop.xlane.xlu0 %432
        %v434 = vmul.f32 %v433, %v427
        %v435 = vadd.f32 %v434, 1e-05
        %v436 = vrsqrt.pop %v435
        %v437 = vmul.f32 %v429, %v436
        %v438 = vlaneseq
        %v439 = vshrl.u32 %v438, 7
        %v440 = vsub.s32 0, %v439
        %v441 = vrot.slane %v331, %v440
        %v442 = vmul.f32 %v437, %v441
        %v443 = vlaneseq
        %v444 = vshrl.u32 %v443, 7
        %v445 = vsub.s32 3, %v444
        %v446 = vrot.slane %v331, %v445
        %v447 = vadd.f32 %v442, %v446
        %v448 = vlaneseq
        %v449 = vshrl.u32 %v448, 7
        %v450 = vsub.s32 6, %v449
        %v451 = vrot.slane %v331, %v450
        %v453 = vsel %vm423, %v447, 0
        %455 = vmatprep.subr.mxu0 0.0
        %456 = vmatpush1.msra.mxu0 %v316
        %457 = vmatprep.subr.mxu0 0.0
        %458 = vmatpush1.msra.mxu0 %v317
        %459 = vmatprep.subr.mxu0 0.0
        %460 = vmatpush1.msra.mxu0 %v318
        %461 = vmatprep.subr.mxu0 0.0
        %462 = vmatpush1.msra.mxu0 %v319
        %463 = vmatprep.subr.mxu0 0.0
        %464 = vmatpush1.msra.mxu0 0.0
        %465 = vmatprep.subr.mxu0 0.0
        %466 = vmatpush1.msra.mxu0 0.0
        %467 = vmatprep.subr.mxu0 0.0
        %468 = vmatpush1.msra.mxu0 0.0
        %469 = vmatprep.subr.mxu0 0.0
        %470 = vmatpush1.msra.mxu0 0.0
        %471 = vmatprep.subr.mxu0 0.0
        %472 = vmatpush1.msra.mxu0 0.0
        %473 = vmatprep.subr.mxu0 0.0
        %474 = vmatpush1.msra.mxu0 0.0
        %475 = vmatprep.subr.mxu0 0.0
        %476 = vmatpush1.msra.mxu0 0.0
        %477 = vmatprep.subr.mxu0 0.0
        %478 = vmatpush1.msra.mxu0 0.0
        %479 = vmatprep.subr.mxu0 0.0
        %480 = vmatpush1.msra.mxu0 0.0
        %481 = vmatprep.subr.mxu0 0.0
        %482 = vmatpush1.msra.mxu0 0.0
        %483 = vmatprep.subr.mxu0 0.0
        %484 = vmatpush1.msra.mxu0 0.0
        %485 = vmatprep.subr.mxu0 0.0
        %486 = vmatpush1.msra.mxu0 0.0
        %487 = vmatprep.subr.mxu0 0.0
        %488 = vmatpush1.msra.mxu0 0.0
        %489 = vmatprep.subr.mxu0 0.0
        %490 = vmatpush1.msra.mxu0 0.0
        %491 = vmatprep.subr.mxu0 0.0
        %492 = vmatpush1.msra.mxu0 0.0
        %493 = vmatprep.subr.mxu0 0.0
        %494 = vmatpush1.msra.mxu0 0.0
        %495 = vmatprep.subr.mxu0 0.0
        %496 = vmatpush1.msra.mxu0 0.0
        %497 = vmatprep.subr.mxu0 0.0
        %498 = vmatpush1.msra.mxu0 0.0
        %499 = vmatprep.subr.mxu0 0.0
        %500 = vmatpush1.msra.mxu0 0.0
        %501 = vmatprep.subr.mxu0 0.0
        %502 = vmatpush1.msra.mxu0 0.0
        %503 = vmatprep.subr.mxu0 0.0
        %504 = vmatpush1.msra.mxu0 0.0
        %505 = vmatprep.subr.mxu0 0.0
        %506 = vmatpush1.msra.mxu0 0.0
        %507 = vmatprep.subr.mxu0 0.0
        %508 = vmatpush1.msra.mxu0 0.0
        %509 = vmatprep.subr.mxu0 0.0
        %510 = vmatpush1.msra.mxu0 0.0
        %511 = vmatprep.subr.mxu0 0.0
        %512 = vmatpush1.msra.mxu0 0.0
        %513 = vmatprep.subr.mxu0 0.0
        %514 = vmatpush1.msra.mxu0 0.0
        %515 = vmatprep.subr.mxu0 0.0
        %516 = vmatpush1.msra.mxu0 0.0
        %517 = vmatprep.subr.mxu0 0.0
        %518 = vmatpush1.msra.mxu0 0.0
        %519 = vmatprep.mubr.f32.mxu0 0.0
        %520 = vmatmul.mubr.f32.gmra.mrb[0].mxu0 %v453
        %v521 = vpop.f32.mrb[0].mxu0
        %v522 = vadd.f32 %v451, %v521
        %v523 = vpop.f32.mrb[0].mxu0
        %524 = vdwg.mxu0
        %v525 = vmax.f32 %v522, 0.0
        %v526 = vadd.f32 %v525, 0.0
        %v527 = vlaneseq
        %v528 = vshrl.u32 %v527, 7
        %v529 = vsub.s32 1, %v528
        %v530 = vrot.slane %v332, %v529
        %v531 = vsel %vm423, %v346, 0
        %533 = vmatprep.subr.mxu0 0.0
        %534 = vmatpush1.msra.mxu0 %v280
        %535 = vmatprep.subr.mxu0 0.0
        %536 = vmatpush1.msra.mxu0 %v281
        %537 = vmatprep.subr.mxu0 0.0
        %538 = vmatpush1.msra.mxu0 %v282
        %539 = vmatprep.subr.mxu0 0.0
        %540 = vmatpush1.msra.mxu0 %v283
        %541 = vmatprep.subr.mxu0 0.0
        %542 = vmatpush1.msra.mxu0 0.0
        %543 = vmatprep.subr.mxu0 0.0
        %544 = vmatpush1.msra.mxu0 0.0
        %545 = vmatprep.subr.mxu0 0.0
        %546 = vmatpush1.msra.mxu0 0.0
        %547 = vmatprep.subr.mxu0 0.0
        %548 = vmatpush1.msra.mxu0 0.0
        %549 = vmatprep.subr.mxu0 0.0
        %550 = vmatpush1.msra.mxu0 0.0
        %551 = vmatprep.subr.mxu0 0.0
        %552 = vmatpush1.msra.mxu0 0.0
        %553 = vmatprep.subr.mxu0 0.0
        %554 = vmatpush1.msra.mxu0 0.0
        %555 = vmatprep.subr.mxu0 0.0
        %556 = vmatpush1.msra.mxu0 0.0
        %557 = vmatprep.subr.mxu0 0.0
        %558 = vmatpush1.msra.mxu0 0.0
        %559 = vmatprep.subr.mxu0 0.0
        %560 = vmatpush1.msra.mxu0 0.0
        %561 = vmatprep.subr.mxu0 0.0
        %562 = vmatpush1.msra.mxu0 0.0
        %563 = vmatprep.subr.mxu0 0.0
        %564 = vmatpush1.msra.mxu0 0.0
        %565 = vmatprep.subr.mxu0 0.0
        %566 = vmatpush1.msra.mxu0 0.0
        %567 = vmatprep.subr.mxu0 0.0
        %568 = vmatpush1.msra.mxu0 0.0
        %569 = vmatprep.subr.mxu0 0.0
        %570 = vmatpush1.msra.mxu0 0.0
        %571 = vmatprep.subr.mxu0 0.0
        %572 = vmatpush1.msra.mxu0 0.0
        %573 = vmatprep.subr.mxu0 0.0
        %574 = vmatpush1.msra.mxu0 0.0
        %575 = vmatprep.subr.mxu0 0.0
        %576 = vmatpush1.msra.mxu0 0.0
        %577 = vmatprep.subr.mxu0 0.0
        %578 = vmatpush1.msra.mxu0 0.0
        %579 = vmatprep.subr.mxu0 0.0
        %580 = vmatpush1.msra.mxu0 0.0
        %581 = vmatprep.subr.mxu0 0.0
        %582 = vmatpush1.msra.mxu0 0.0
        %583 = vmatprep.subr.mxu0 0.0
        %584 = vmatpush1.msra.mxu0 0.0
        %585 = vmatprep.subr.mxu0 0.0
        %586 = vmatpush1.msra.mxu0 0.0
        %587 = vmatprep.subr.mxu0 0.0
        %588 = vmatpush1.msra.mxu0 0.0
        %589 = vmatprep.subr.mxu0 0.0
        %590 = vmatpush1.msra.mxu0 0.0
        %591 = vmatprep.subr.mxu0 0.0
        %592 = vmatpush1.msra.mxu0 0.0
        %593 = vmatprep.subr.mxu0 0.0
        %594 = vmatpush1.msra.mxu0 0.0
        %595 = vmatprep.subr.mxu0 0.0
        %596 = vmatpush1.msra.mxu0 0.0
        %597 = vmatprep.mubr.f32.mxu0 0.0
        %598 = vmatmul.mubr.f32.gmra.mrb[0].mxu0 %v531
        %v599 = vpop.f32.mrb[0].mxu0
        %v600 = vadd.f32 %v530, %v599
        %v601 = vpop.f32.mrb[0].mxu0
        %602 = vdwg.mxu0
        %v603 = vmax.f32 %v600, 0.0
        %v604 = vsel %vm423, %v603, 0.0
        %v605 = vrot.slane %v604, 4
        %v606 = vadd.f32 %v604, %v605
        %v607 = vrot.slane %v606, 2
        %v608 = vadd.f32 %v606, %v607
        %v609 = vrot.slane %v608, 1
        %v610 = vadd.f32 %v608, %v609
        %v611 = vrcp.pop 8.0
        %v612 = vmul.f32 %v610, %v611
        %v613 = vsub.f32 %v603, %v612
        %v614 = vmul.f32 %v613, %v613
        %v615 = vsel %vm423, %v614, 0.0
        %v616 = vrot.slane %v615, 4
        %v617 = vadd.f32 %v615, %v616
        %v618 = vrot.slane %v617, 2
        %v619 = vadd.f32 %v617, %v618
        %v620 = vrot.slane %v619, 1
        %v621 = vadd.f32 %v619, %v620
        %v622 = vmul.f32 %v621, %v611
        %v623 = vadd.f32 %v622, 1e-05
        %v624 = vrsqrt.pop %v623
        %v625 = vmul.f32 %v613, %v624
        %626 = vset.pattern.permute.xlu0 3
        %627 = vperm.xlu0 %626, %v333
        %v628 = vpop.permute.xlu0 %627
        %v630 = vmul.f32 %v625, %v628
        %631 = vset.pattern.permute.xlu0 6
        %632 = vperm.xlu0 %631, %v333
        %v633 = vpop.permute.xlu0 %632
        %v635 = vadd.f32 %v630, %v633
        %636 = vset.pattern.permute.xlu0 9
        %637 = vperm.xlu0 %636, %v333
        %v638 = vpop.permute.xlu0 %637
        %v641 = vsel %vm348, %v328, 0
        %643 = vmatprep.subr.mxu0 0.0
        %644 = vmatpush1.msra.mxu0 %v635
        %645 = vmatprep.subr.mxu0 0.0
        %646 = vmatpush1.msra.mxu0 0.0
        %647 = vmatprep.subr.mxu0 0.0
        %648 = vmatpush1.msra.mxu0 0.0
        %649 = vmatprep.subr.mxu0 0.0
        %650 = vmatpush1.msra.mxu0 0.0
        %651 = vmatprep.subr.mxu0 0.0
        %652 = vmatpush1.msra.mxu0 0.0
        %653 = vmatprep.subr.mxu0 0.0
        %654 = vmatpush1.msra.mxu0 0.0
        %655 = vmatprep.subr.mxu0 0.0
        %656 = vmatpush1.msra.mxu0 0.0
        %657 = vmatprep.subr.mxu0 0.0
        %658 = vmatpush1.msra.mxu0 0.0
        %659 = vmatprep.subr.mxu0 0.0
        %660 = vmatpush1.msra.mxu0 0.0
        %661 = vmatprep.subr.mxu0 0.0
        %662 = vmatpush1.msra.mxu0 0.0
        %663 = vmatprep.subr.mxu0 0.0
        %664 = vmatpush1.msra.mxu0 0.0
        %665 = vmatprep.subr.mxu0 0.0
        %666 = vmatpush1.msra.mxu0 0.0
        %667 = vmatprep.subr.mxu0 0.0
        %668 = vmatpush1.msra.mxu0 0.0
        %669 = vmatprep.subr.mxu0 0.0
        %670 = vmatpush1.msra.mxu0 0.0
        %671 = vmatprep.subr.mxu0 0.0
        %672 = vmatpush1.msra.mxu0 0.0
        %673 = vmatprep.subr.mxu0 0.0
        %674 = vmatpush1.msra.mxu0 0.0
        %675 = vmatprep.subr.mxu0 0.0
        %676 = vmatpush1.msra.mxu0 0.0
        %677 = vmatprep.subr.mxu0 0.0
        %678 = vmatpush1.msra.mxu0 0.0
        %679 = vmatprep.subr.mxu0 0.0
        %680 = vmatpush1.msra.mxu0 0.0
        %681 = vmatprep.subr.mxu0 0.0
        %682 = vmatpush1.msra.mxu0 0.0
        %683 = vmatprep.subr.mxu0 0.0
        %684 = vmatpush1.msra.mxu0 0.0
        %685 = vmatprep.subr.mxu0 0.0
        %686 = vmatpush1.msra.mxu0 0.0
        %687 = vmatprep.subr.mxu0 0.0
        %688 = vmatpush1.msra.mxu0 0.0
        %689 = vmatprep.subr.mxu0 0.0
        %690 = vmatpush1.msra.mxu0 0.0
        %691 = vmatprep.subr.mxu0 0.0
        %692 = vmatpush1.msra.mxu0 0.0
        %693 = vmatprep.subr.mxu0 0.0
        %694 = vmatpush1.msra.mxu0 0.0
        %695 = vmatprep.subr.mxu0 0.0
        %696 = vmatpush1.msra.mxu0 0.0
        %697 = vmatprep.subr.mxu0 0.0
        %698 = vmatpush1.msra.mxu0 0.0
        %699 = vmatprep.subr.mxu0 0.0
        %700 = vmatpush1.msra.mxu0 0.0
        %701 = vmatprep.subr.mxu0 0.0
        %702 = vmatpush1.msra.mxu0 0.0
        %703 = vmatprep.subr.mxu0 0.0
        %704 = vmatpush1.msra.mxu0 0.0
        %705 = vmatprep.subr.mxu0 0.0
        %706 = vmatpush1.msra.mxu0 0.0
        %707 = vmatprep.mubr.f32.mxu0 0.0
        %708 = vmatmul.mubr.f32.gmra.mrb[0].mxu0 %v641
        %v709 = vpop.f32.mrb[0].mxu0
        %v710 = vadd.f32 %v638, %v709
        %v711 = vpop.f32.mrb[0].mxu0
        %712 = vdwg.mxu0
        %v713 = vmax.f32 %v710, 0.0
        %v714 = vadd.f32 %v526, %v713
        %715 = vrot.lane.b32.xlu0 %v344, 127
        %v716 = vpop.permute.xlu0 %715
        %717 = vset.pattern.permute.xlu0 1
        %718 = vperm.xlu0 %717, %v333
        %v719 = vpop.permute.xlu0 %718
        %721 = vrot.lane.b32.xlu0 %v279, 120
        %v722 = vpop.permute.xlu0 %721
        %723 = vrot.lane.b32.xlu0 %v716, 127
        %v724 = vpop.permute.xlu0 %723
        %725 = vrot.lane.b32.xlu0 %v346, 127
        %v726 = vpop.permute.xlu0 %725
        %vm730 = vcmask 195584
        %v731 = vsel %vm730, %v722, 0
        %733 = vmatprep.subr.mxu0 0.0
        %734 = vmatpush1.msra.mxu0 %v716
        %735 = vmatprep.subr.mxu0 0.0
        %736 = vmatpush1.msra.mxu0 %v724
        %737 = vmatprep.subr.mxu0 0.0
        %738 = vmatpush1.msra.mxu0 %v726
        %739 = vmatprep.subr.mxu0 0.0
        %740 = vmatpush1.msra.mxu0 0.0
        %741 = vmatprep.subr.mxu0 0.0
        %742 = vmatpush1.msra.mxu0 0.0
        %743 = vmatprep.subr.mxu0 0.0
        %744 = vmatpush1.msra.mxu0 0.0
        %745 = vmatprep.subr.mxu0 0.0
        %746 = vmatpush1.msra.mxu0 0.0
        %747 = vmatprep.subr.mxu0 0.0
        %748 = vmatpush1.msra.mxu0 0.0
        %749 = vmatprep.subr.mxu0 0.0
        %750 = vmatpush1.msra.mxu0 0.0
        %751 = vmatprep.subr.mxu0 0.0
        %752 = vmatpush1.msra.mxu0 0.0
        %753 = vmatprep.subr.mxu0 0.0
        %754 = vmatpush1.msra.mxu0 0.0
        %755 = vmatprep.subr.mxu0 0.0
        %756 = vmatpush1.msra.mxu0 0.0
        %757 = vmatprep.subr.mxu0 0.0
        %758 = vmatpush1.msra.mxu0 0.0
        %759 = vmatprep.subr.mxu0 0.0
        %760 = vmatpush1.msra.mxu0 0.0
        %761 = vmatprep.subr.mxu0 0.0
        %762 = vmatpush1.msra.mxu0 0.0
        %763 = vmatprep.subr.mxu0 0.0
        %764 = vmatpush1.msra.mxu0 0.0
        %765 = vmatprep.subr.mxu0 0.0
        %766 = vmatpush1.msra.mxu0 0.0
        %767 = vmatprep.subr.mxu0 0.0
        %768 = vmatpush1.msra.mxu0 0.0
        %769 = vmatprep.subr.mxu0 0.0
        %770 = vmatpush1.msra.mxu0 0.0
        %771 = vmatprep.subr.mxu0 0.0
        %772 = vmatpush1.msra.mxu0 0.0
        %773 = vmatprep.subr.mxu0 0.0
        %774 = vmatpush1.msra.mxu0 0.0
        %775 = vmatprep.subr.mxu0 0.0
        %776 = vmatpush1.msra.mxu0 0.0
        %777 = vmatprep.subr.mxu0 0.0
        %778 = vmatpush1.msra.mxu0 0.0
        %779 = vmatprep.subr.mxu0 0.0
        %780 = vmatpush1.msra.mxu0 0.0
        %781 = vmatprep.subr.mxu0 0.0
        %782 = vmatpush1.msra.mxu0 0.0
        %783 = vmatprep.subr.mxu0 0.0
        %784 = vmatpush1.msra.mxu0 0.0
        %785 = vmatprep.subr.mxu0 0.0
        %786 = vmatpush1.msra.mxu0 0.0
        %787 = vmatprep.subr.mxu0 0.0
        %788 = vmatpush1.msra.mxu0 0.0
        %789 = vmatprep.subr.mxu0 0.0
        %790 = vmatpush1.msra.mxu0 0.0
        %791 = vmatprep.subr.mxu0 0.0
        %792 = vmatpush1.msra.mxu0 0.0
        %793 = vmatprep.subr.mxu0 0.0
        %794 = vmatpush1.msra.mxu0 0.0
        %795 = vmatprep.subr.mxu0 0.0
        %796 = vmatpush1.msra.mxu0 0.0
        %797 = vmatprep.mubr.f32.mxu0 0.0
        %798 = vmatmul.mubr.f32.gmra.mrb[0].mxu0 %v731
        %v799 = vpop.f32.mrb[0].mxu0
        %v800 = vadd.f32 %v719, %v799
        %v801 = vpop.f32.mrb[0].mxu0
        %802 = vdwg.mxu0
        %v803 = vmax.f32 %v800, 0.0
        %v804 = vsel %vm423, %v803, 0.0
        %805 = vadd.xlane.f32.xlu0 %v804
        %v806 = vpop.xlane.xlu0 %805
        %v807 = vmul.f32 %v806, %v427
        %v808 = vsub.f32 %v803, %v807
        %v809 = vmul.f32 %v808, %v808
        %v810 = vsel %vm423, %v809, 0.0
        %811 = vadd.xlane.f32.xlu0 %v810
        %v812 = vpop.xlane.xlu0 %811
        %v813 = vmul.f32 %v812, %v427
        %v814 = vadd.f32 %v813, 1e-05
        %v815 = vrsqrt.pop %v814
        %v816 = vmul.f32 %v808, %v815
        %v817 = vlaneseq
        %v818 = vshrl.u32 %v817, 7
        %v819 = vsub.s32 1, %v818
        %v820 = vrot.slane %v331, %v819
        %v821 = vmul.f32 %v816, %v820
        %v822 = vlaneseq
        %v823 = vshrl.u32 %v822, 7
        %v824 = vsub.s32 4, %v823
        %v825 = vrot.slane %v331, %v824
        %v826 = vadd.f32 %v821, %v825
        %v827 = vlaneseq
        %v828 = vshrl.u32 %v827, 7
        %v829 = vsub.s32 7, %v828
        %v830 = vrot.slane %v331, %v829
        %v832 = vsel %vm423, %v826, 0
        %834 = vmatprep.subr.mxu0 0.0
        %835 = vmatpush1.msra.mxu0 %v320
        %836 = vmatprep.subr.mxu0 0.0
        %837 = vmatpush1.msra.mxu0 %v321
        %838 = vmatprep.subr.mxu0 0.0
        %839 = vmatpush1.msra.mxu0 %v322
        %840 = vmatprep.subr.mxu0 0.0
        %841 = vmatpush1.msra.mxu0 %v323
        %842 = vmatprep.subr.mxu0 0.0
        %843 = vmatpush1.msra.mxu0 0.0
        %844 = vmatprep.subr.mxu0 0.0
        %845 = vmatpush1.msra.mxu0 0.0
        %846 = vmatprep.subr.mxu0 0.0
        %847 = vmatpush1.msra.mxu0 0.0
        %848 = vmatprep.subr.mxu0 0.0
        %849 = vmatpush1.msra.mxu0 0.0
        %850 = vmatprep.subr.mxu0 0.0
        %851 = vmatpush1.msra.mxu0 0.0
        %852 = vmatprep.subr.mxu0 0.0
        %853 = vmatpush1.msra.mxu0 0.0
        %854 = vmatprep.subr.mxu0 0.0
        %855 = vmatpush1.msra.mxu0 0.0
        %856 = vmatprep.subr.mxu0 0.0
        %857 = vmatpush1.msra.mxu0 0.0
        %858 = vmatprep.subr.mxu0 0.0
        %859 = vmatpush1.msra.mxu0 0.0
        %860 = vmatprep.subr.mxu0 0.0
        %861 = vmatpush1.msra.mxu0 0.0
        %862 = vmatprep.subr.mxu0 0.0
        %863 = vmatpush1.msra.mxu0 0.0
        %864 = vmatprep.subr.mxu0 0.0
        %865 = vmatpush1.msra.mxu0 0.0
        %866 = vmatprep.subr.mxu0 0.0
        %867 = vmatpush1.msra.mxu0 0.0
        %868 = vmatprep.subr.mxu0 0.0
        %869 = vmatpush1.msra.mxu0 0.0
        %870 = vmatprep.subr.mxu0 0.0
        %871 = vmatpush1.msra.mxu0 0.0
        %872 = vmatprep.subr.mxu0 0.0
        %873 = vmatpush1.msra.mxu0 0.0
        %874 = vmatprep.subr.mxu0 0.0
        %875 = vmatpush1.msra.mxu0 0.0
        %876 = vmatprep.subr.mxu0 0.0
        %877 = vmatpush1.msra.mxu0 0.0
        %878 = vmatprep.subr.mxu0 0.0
        %879 = vmatpush1.msra.mxu0 0.0
        %880 = vmatprep.subr.mxu0 0.0
        %881 = vmatpush1.msra.mxu0 0.0
        %882 = vmatprep.subr.mxu0 0.0
        %883 = vmatpush1.msra.mxu0 0.0
        %884 = vmatprep.subr.mxu0 0.0
        %885 = vmatpush1.msra.mxu0 0.0
        %886 = vmatprep.subr.mxu0 0.0
        %887 = vmatpush1.msra.mxu0 0.0
        %888 = vmatprep.subr.mxu0 0.0
        %889 = vmatpush1.msra.mxu0 0.0
        %890 = vmatprep.subr.mxu0 0.0
        %891 = vmatpush1.msra.mxu0 0.0
        %892 = vmatprep.subr.mxu0 0.0
        %893 = vmatpush1.msra.mxu0 0.0
        %894 = vmatprep.subr.mxu0 0.0
        %895 = vmatpush1.msra.mxu0 0.0
        %896 = vmatprep.subr.mxu0 0.0
        %897 = vmatpush1.msra.mxu0 0.0
        %898 = vmatprep.mubr.f32.mxu0 0.0
        %899 = vmatmul.mubr.f32.gmra.mrb[0].mxu0 %v832
        %v900 = vpop.f32.mrb[0].mxu0
        %v901 = vadd.f32 %v830, %v900
        %v902 = vpop.f32.mrb[0].mxu0
        %903 = vdwg.mxu0
        %v904 = vmax.f32 %v901, 0.0
        %v905 = vadd.f32 %v714, %v904
        %906 = vmatprep.subr.mxu0 0.0
        %907 = vmatpush1.msra.mxu0 %v288
        %908 = vmatprep.subr.mxu0 0.0
        %909 = vmatpush1.msra.mxu0 %v289
        %910 = vmatprep.subr.mxu0 0.0
        %911 = vmatpush1.msra.mxu0 %v290
        %912 = vmatprep.subr.mxu0 0.0
        %913 = vmatpush1.msra.mxu0 %v291
        %914 = vmatprep.subr.mxu0 0.0
        %915 = vmatpush1.msra.mxu0 0.0
        %916 = vmatprep.subr.mxu0 0.0
        %917 = vmatpush1.msra.mxu0 0.0
        %918 = vmatprep.subr.mxu0 0.0
        %919 = vmatpush1.msra.mxu0 0.0
        %920 = vmatprep.subr.mxu0 0.0
        %921 = vmatpush1.msra.mxu0 0.0
        %922 = vmatprep.subr.mxu0 0.0
        %923 = vmatpush1.msra.mxu0 0.0
        %924 = vmatprep.subr.mxu0 0.0
        %925 = vmatpush1.msra.mxu0 0.0
        %926 = vmatprep.subr.mxu0 0.0
        %927 = vmatpush1.msra.mxu0 0.0
        %928 = vmatprep.subr.mxu0 0.0
        %929 = vmatpush1.msra.mxu0 0.0
        %930 = vmatprep.subr.mxu0 0.0
        %931 = vmatpush1.msra.mxu0 0.0
        %932 = vmatprep.subr.mxu0 0.0
        %933 = vmatpush1.msra.mxu0 0.0
        %934 = vmatprep.subr.mxu0 0.0
        %935 = vmatpush1.msra.mxu0 0.0
        %936 = vmatprep.subr.mxu0 0.0
        %937 = vmatpush1.msra.mxu0 0.0
        %938 = vmatprep.subr.mxu0 0.0
        %939 = vmatpush1.msra.mxu0 0.0
        %940 = vmatprep.subr.mxu0 0.0
        %941 = vmatpush1.msra.mxu0 0.0
        %942 = vmatprep.subr.mxu0 0.0
        %943 = vmatpush1.msra.mxu0 0.0
        %944 = vmatprep.subr.mxu0 0.0
        %945 = vmatpush1.msra.mxu0 0.0
        %946 = vmatprep.subr.mxu0 0.0
        %947 = vmatpush1.msra.mxu0 0.0
        %948 = vmatprep.subr.mxu0 0.0
        %949 = vmatpush1.msra.mxu0 0.0
        %950 = vmatprep.subr.mxu0 0.0
        %951 = vmatpush1.msra.mxu0 0.0
        %952 = vmatprep.subr.mxu0 0.0
        %953 = vmatpush1.msra.mxu0 0.0
        %954 = vmatprep.subr.mxu0 0.0
        %955 = vmatpush1.msra.mxu0 0.0
        %956 = vmatprep.subr.mxu0 0.0
        %957 = vmatpush1.msra.mxu0 0.0
        %958 = vmatprep.subr.mxu0 0.0
        %959 = vmatpush1.msra.mxu0 0.0
        %960 = vmatprep.subr.mxu0 0.0
        %961 = vmatpush1.msra.mxu0 0.0
        %962 = vmatprep.subr.mxu0 0.0
        %963 = vmatpush1.msra.mxu0 0.0
        %964 = vmatprep.subr.mxu0 0.0
        %965 = vmatpush1.msra.mxu0 0.0
        %966 = vmatprep.subr.mxu0 0.0
        %967 = vmatpush1.msra.mxu0 0.0
        %968 = vmatprep.subr.mxu0 0.0
        %969 = vmatpush1.msra.mxu0 0.0
        %970 = vmatprep.mubr.f32.mxu0 0.0
        %971 = vmatmul.mubr.f32.gmra.mrb[0].mxu0 %v531
        %v972 = vpop.f32.mrb[0].mxu0
        %v973 = vadd.f32 0.0, %v972
        %v974 = vpop.f32.mrb[0].mxu0
        %975 = vdwg.mxu0
        %vm976 = vcmask 1046528
        %v977 = vrot.slane %v277, 1
        %v978 = vrot.slane %v278, 1
        %v979 = vsel %vm976, %v977, %v978
        %980 = vrot.lane.b32.xlu0 %v979, 126
        %v981 = vpop.permute.xlu0 %980
        %v982 = vsel %vm423, %v981, 0
        %984 = vmatprep.subr.mxu0 0.0
        %985 = vmatpush1.msra.mxu0 %v284
        %986 = vmatprep.subr.mxu0 0.0
        %987 = vmatpush1.msra.mxu0 %v285
        %988 = vmatprep.subr.mxu0 0.0
        %989 = vmatpush1.msra.mxu0 %v286
        %990 = vmatprep.subr.mxu0 0.0
        %991 = vmatpush1.msra.mxu0 %v287
        %992 = vmatprep.subr.mxu0 0.0
        %993 = vmatpush1.msra.mxu0 0.0
        %994 = vmatprep.subr.mxu0 0.0
        %995 = vmatpush1.msra.mxu0 0.0
        %996 = vmatprep.subr.mxu0 0.0
        %997 = vmatpush1.msra.mxu0 0.0
        %998 = vmatprep.subr.mxu0 0.0
        %999 = vmatpush1.msra.mxu0 0.0
        %1000 = vmatprep.subr.mxu0 0.0
        %1001 = vmatpush1.msra.mxu0 0.0
        %1002 = vmatprep.subr.mxu0 0.0
        %1003 = vmatpush1.msra.mxu0 0.0
        %1004 = vmatprep.subr.mxu0 0.0
        %1005 = vmatpush1.msra.mxu0 0.0
        %1006 = vmatprep.subr.mxu0 0.0
        %1007 = vmatpush1.msra.mxu0 0.0
        %1008 = vmatprep.subr.mxu0 0.0
        %1009 = vmatpush1.msra.mxu0 0.0
        %1010 = vmatprep.subr.mxu0 0.0
        %1011 = vmatpush1.msra.mxu0 0.0
        %1012 = vmatprep.subr.mxu0 0.0
        %1013 = vmatpush1.msra.mxu0 0.0
        %1014 = vmatprep.subr.mxu0 0.0
        %1015 = vmatpush1.msra.mxu0 0.0
        %1016 = vmatprep.subr.mxu0 0.0
        %1017 = vmatpush1.msra.mxu0 0.0
        %1018 = vmatprep.subr.mxu0 0.0
        %1019 = vmatpush1.msra.mxu0 0.0
        %1020 = vmatprep.subr.mxu0 0.0
        %1021 = vmatpush1.msra.mxu0 0.0
        %1022 = vmatprep.subr.mxu0 0.0
        %1023 = vmatpush1.msra.mxu0 0.0
        %1024 = vmatprep.subr.mxu0 0.0
        %1025 = vmatpush1.msra.mxu0 0.0
        %1026 = vmatprep.subr.mxu0 0.0
        %1027 = vmatpush1.msra.mxu0 0.0
        %1028 = vmatprep.subr.mxu0 0.0
        %1029 = vmatpush1.msra.mxu0 0.0
        %1030 = vmatprep.subr.mxu0 0.0
        %1031 = vmatpush1.msra.mxu0 0.0
        %1032 = vmatprep.subr.mxu0 0.0
        %1033 = vmatpush1.msra.mxu0 0.0
        %1034 = vmatprep.subr.mxu0 0.0
        %1035 = vmatpush1.msra.mxu0 0.0
        %1036 = vmatprep.subr.mxu0 0.0
        %1037 = vmatpush1.msra.mxu0 0.0
        %1038 = vmatprep.subr.mxu0 0.0
        %1039 = vmatpush1.msra.mxu0 0.0
        %1040 = vmatprep.subr.mxu0 0.0
        %1041 = vmatpush1.msra.mxu0 0.0
        %1042 = vmatprep.subr.mxu0 0.0
        %1043 = vmatpush1.msra.mxu0 0.0
        %1044 = vmatprep.subr.mxu0 0.0
        %1045 = vmatpush1.msra.mxu0 0.0
        %1046 = vmatprep.subr.mxu0 0.0
        %1047 = vmatpush1.msra.mxu0 0.0
        %1048 = vmatprep.mubr.f32.mxu0 0.0
        %1049 = vmatmul.mubr.f32.gmra.mrb[0].mxu0 %v982
        %v1050 = vpop.f32.mrb[0].mxu0
        %v1051 = vadd.f32 %v973, %v1050
        %v1052 = vpop.f32.mrb[0].mxu0
        %1053 = vdwg.mxu0
        %vm1054 = vcmask 1044480
        %v1055 = vrot.slane %v277, 3
        %v1056 = vrot.slane %v278, 3
        %v1057 = vsel %vm1054, %v1055, %v1056
        %1058 = vrot.lane.b32.xlu0 %v1057, 126
        %v1059 = vpop.permute.xlu0 %1058
        %v1060 = vsel %vm423, %v1059, 0
        %1062 = vmatprep.subr.mxu0 0.0
        %1063 = vmatpush1.msra.mxu0 %v292
        %1064 = vmatprep.subr.mxu0 0.0
        %1065 = vmatpush1.msra.mxu0 %v293
        %1066 = vmatprep.subr.mxu0 0.0
        %1067 = vmatpush1.msra.mxu0 %v294
        %1068 = vmatprep.subr.mxu0 0.0
        %1069 = vmatpush1.msra.mxu0 %v295
        %1070 = vmatprep.subr.mxu0 0.0
        %1071 = vmatpush1.msra.mxu0 0.0
        %1072 = vmatprep.subr.mxu0 0.0
        %1073 = vmatpush1.msra.mxu0 0.0
        %1074 = vmatprep.subr.mxu0 0.0
        %1075 = vmatpush1.msra.mxu0 0.0
        %1076 = vmatprep.subr.mxu0 0.0
        %1077 = vmatpush1.msra.mxu0 0.0
        %1078 = vmatprep.subr.mxu0 0.0
        %1079 = vmatpush1.msra.mxu0 0.0
        %1080 = vmatprep.subr.mxu0 0.0
        %1081 = vmatpush1.msra.mxu0 0.0
        %1082 = vmatprep.subr.mxu0 0.0
        %1083 = vmatpush1.msra.mxu0 0.0
        %1084 = vmatprep.subr.mxu0 0.0
        %1085 = vmatpush1.msra.mxu0 0.0
        %1086 = vmatprep.subr.mxu0 0.0
        %1087 = vmatpush1.msra.mxu0 0.0
        %1088 = vmatprep.subr.mxu0 0.0
        %1089 = vmatpush1.msra.mxu0 0.0
        %1090 = vmatprep.subr.mxu0 0.0
        %1091 = vmatpush1.msra.mxu0 0.0
        %1092 = vmatprep.subr.mxu0 0.0
        %1093 = vmatpush1.msra.mxu0 0.0
        %1094 = vmatprep.subr.mxu0 0.0
        %1095 = vmatpush1.msra.mxu0 0.0
        %1096 = vmatprep.subr.mxu0 0.0
        %1097 = vmatpush1.msra.mxu0 0.0
        %1098 = vmatprep.subr.mxu0 0.0
        %1099 = vmatpush1.msra.mxu0 0.0
        %1100 = vmatprep.subr.mxu0 0.0
        %1101 = vmatpush1.msra.mxu0 0.0
        %1102 = vmatprep.subr.mxu0 0.0
        %1103 = vmatpush1.msra.mxu0 0.0
        %1104 = vmatprep.subr.mxu0 0.0
        %1105 = vmatpush1.msra.mxu0 0.0
        %1106 = vmatprep.subr.mxu0 0.0
        %1107 = vmatpush1.msra.mxu0 0.0
        %1108 = vmatprep.subr.mxu0 0.0
        %1109 = vmatpush1.msra.mxu0 0.0
        %1110 = vmatprep.subr.mxu0 0.0
        %1111 = vmatpush1.msra.mxu0 0.0
        %1112 = vmatprep.subr.mxu0 0.0
        %1113 = vmatpush1.msra.mxu0 0.0
        %1114 = vmatprep.subr.mxu0 0.0
        %1115 = vmatpush1.msra.mxu0 0.0
        %1116 = vmatprep.subr.mxu0 0.0
        %1117 = vmatpush1.msra.mxu0 0.0
        %1118 = vmatprep.subr.mxu0 0.0
        %1119 = vmatpush1.msra.mxu0 0.0
        %1120 = vmatprep.subr.mxu0 0.0
        %1121 = vmatpush1.msra.mxu0 0.0
        %1122 = vmatprep.subr.mxu0 0.0
        %1123 = vmatpush1.msra.mxu0 0.0
        %1124 = vmatprep.subr.mxu0 0.0
        %1125 = vmatpush1.msra.mxu0 0.0
        %1126 = vmatprep.mubr.f32.mxu0 0.0
        %1127 = vmatmul.mubr.f32.gmra.mrb[0].mxu0 %v1060
        %v1128 = vpop.f32.mrb[0].mxu0
        %v1129 = vadd.f32 0.0, %v1128
        %v1130 = vpop.f32.mrb[0].mxu0
        %1131 = vdwg.mxu0
        %v1132 = vadd.f32 %v1051, %v1129
        %v1133 = vlaneseq
        %v1134 = vshrl.u32 %v1133, 7
        %v1135 = vsub.s32 2, %v1134
        %v1136 = vrot.slane %v332, %v1135
        %v1137 = vadd.f32 %v1132, %v1136
        %v1138 = vmax.f32 %v1137, 0.0
        %v1139 = vsel %vm423, %v1138, 0.0
        %v1140 = vrot.slane %v1139, 4
        %v1141 = vadd.f32 %v1139, %v1140
        %v1142 = vrot.slane %v1141, 2
        %v1143 = vadd.f32 %v1141, %v1142
        %v1144 = vrot.slane %v1143, 1
        %v1145 = vadd.f32 %v1143, %v1144
        %v1146 = vmul.f32 %v1145, %v611
        %v1147 = vsub.f32 %v1138, %v1146
        %v1148 = vmul.f32 %v1147, %v1147
        %v1149 = vsel %vm423, %v1148, 0.0
        %v1150 = vrot.slane %v1149, 4
        %v1151 = vadd.f32 %v1149, %v1150
        %v1152 = vrot.slane %v1151, 2
        %v1153 = vadd.f32 %v1151, %v1152
        %v1154 = vrot.slane %v1153, 1
        %v1155 = vadd.f32 %v1153, %v1154
        %v1156 = vmul.f32 %v1155, %v611
        %v1157 = vadd.f32 %v1156, 1e-05
        %v1158 = vrsqrt.pop %v1157
        %v1159 = vmul.f32 %v1147, %v1158
        %1160 = vset.pattern.permute.xlu0 4
        %1161 = vperm.xlu0 %1160, %v333
        %v1162 = vpop.permute.xlu0 %1161
        %v1164 = vmul.f32 %v1159, %v1162
        %1165 = vset.pattern.permute.xlu0 7
        %1166 = vperm.xlu0 %1165, %v333
        %v1167 = vpop.permute.xlu0 %1166
        %v1169 = vadd.f32 %v1164, %v1167
        %1170 = vset.pattern.permute.xlu0 10
        %1171 = vperm.xlu0 %1170, %v333
        %v1172 = vpop.permute.xlu0 %1171
        %v1175 = vsel %vm348, %v329, 0
        %1177 = vmatprep.subr.mxu0 0.0
        %1178 = vmatpush1.msra.mxu0 %v1169
        %1179 = vmatprep.subr.mxu0 0.0
        %1180 = vmatpush1.msra.mxu0 0.0
        %1181 = vmatprep.subr.mxu0 0.0
        %1182 = vmatpush1.msra.mxu0 0.0
        %1183 = vmatprep.subr.mxu0 0.0
        %1184 = vmatpush1.msra.mxu0 0.0
        %1185 = vmatprep.subr.mxu0 0.0
        %1186 = vmatpush1.msra.mxu0 0.0
        %1187 = vmatprep.subr.mxu0 0.0
        %1188 = vmatpush1.msra.mxu0 0.0
        %1189 = vmatprep.subr.mxu0 0.0
        %1190 = vmatpush1.msra.mxu0 0.0
        %1191 = vmatprep.subr.mxu0 0.0
        %1192 = vmatpush1.msra.mxu0 0.0
        %1193 = vmatprep.subr.mxu0 0.0
        %1194 = vmatpush1.msra.mxu0 0.0
        %1195 = vmatprep.subr.mxu0 0.0
        %1196 = vmatpush1.msra.mxu0 0.0
        %1197 = vmatprep.subr.mxu0 0.0
        %1198 = vmatpush1.msra.mxu0 0.0
        %1199 = vmatprep.subr.mxu0 0.0
        %1200 = vmatpush1.msra.mxu0 0.0
        %1201 = vmatprep.subr.mxu0 0.0
        %1202 = vmatpush1.msra.mxu0 0.0
        %1203 = vmatprep.subr.mxu0 0.0
        %1204 = vmatpush1.msra.mxu0 0.0
        %1205 = vmatprep.subr.mxu0 0.0
        %1206 = vmatpush1.msra.mxu0 0.0
        %1207 = vmatprep.subr.mxu0 0.0
        %1208 = vmatpush1.msra.mxu0 0.0
        %1209 = vmatprep.subr.mxu0 0.0
        %1210 = vmatpush1.msra.mxu0 0.0
        %1211 = vmatprep.subr.mxu0 0.0
        %1212 = vmatpush1.msra.mxu0 0.0
        %1213 = vmatprep.subr.mxu0 0.0
        %1214 = vmatpush1.msra.mxu0 0.0
        %1215 = vmatprep.subr.mxu0 0.0
        %1216 = vmatpush1.msra.mxu0 0.0
        %1217 = vmatprep.subr.mxu0 0.0
        %1218 = vmatpush1.msra.mxu0 0.0
        %1219 = vmatprep.subr.mxu0 0.0
        %1220 = vmatpush1.msra.mxu0 0.0
        %1221 = vmatprep.subr.mxu0 0.0
        %1222 = vmatpush1.msra.mxu0 0.0
        %1223 = vmatprep.subr.mxu0 0.0
        %1224 = vmatpush1.msra.mxu0 0.0
        %1225 = vmatprep.subr.mxu0 0.0
        %1226 = vmatpush1.msra.mxu0 0.0
        %1227 = vmatprep.subr.mxu0 0.0
        %1228 = vmatpush1.msra.mxu0 0.0
        %1229 = vmatprep.subr.mxu0 0.0
        %1230 = vmatpush1.msra.mxu0 0.0
        %1231 = vmatprep.subr.mxu0 0.0
        %1232 = vmatpush1.msra.mxu0 0.0
        %1233 = vmatprep.subr.mxu0 0.0
        %1234 = vmatpush1.msra.mxu0 0.0
        %1235 = vmatprep.subr.mxu0 0.0
        %1236 = vmatpush1.msra.mxu0 0.0
        %1237 = vmatprep.subr.mxu0 0.0
        %1238 = vmatpush1.msra.mxu0 0.0
        %1239 = vmatprep.subr.mxu0 0.0
        %1240 = vmatpush1.msra.mxu0 0.0
        %1241 = vmatprep.mubr.f32.mxu0 0.0
        %1242 = vmatmul.mubr.f32.gmra.mrb[0].mxu0 %v1175
        %v1243 = vpop.f32.mrb[0].mxu0
        %v1244 = vadd.f32 %v1172, %v1243
        %v1245 = vpop.f32.mrb[0].mxu0
        %1246 = vdwg.mxu0
        %v1247 = vmax.f32 %v1244, 0.0
        %v1248 = vadd.f32 %v905, %v1247
        %1250 = vrot.lane.b32.xlu0 %v344, 125
        %v1251 = vpop.permute.xlu0 %1250
        %1253 = vrot.lane.b32.xlu0 %v344, 124
        %v1254 = vpop.permute.xlu0 %1253
        %1256 = vset.pattern.permute.xlu0 2
        %1257 = vperm.xlu0 %1256, %v333
        %v1258 = vpop.permute.xlu0 %1257
        %1260 = vrot.lane.b32.xlu0 %v279, 96
        %v1261 = vpop.permute.xlu0 %1260
        %vm1262 = vcmask 326656
        %v1263 = vsel %vm1262, %v1261, 0
        %1265 = vmatprep.subr.mxu0 0.0
        %1266 = vmatpush1.msra.mxu0 %v344
        %1267 = vmatprep.subr.mxu0 0.0
        %1268 = vmatpush1.msra.mxu0 %v716
        %1269 = vmatprep.subr.mxu0 0.0
        %1270 = vmatpush1.msra.mxu0 %v346
        %1271 = vmatprep.subr.mxu0 0.0
        %1272 = vmatpush1.msra.mxu0 %v1251
        %1273 = vmatprep.subr.mxu0 0.0
        %1274 = vmatpush1.msra.mxu0 %v1254
        %1275 = vmatprep.subr.mxu0 0.0
        %1276 = vmatpush1.msra.mxu0 0.0
        %1277 = vmatprep.subr.mxu0 0.0
        %1278 = vmatpush1.msra.mxu0 0.0
        %1279 = vmatprep.subr.mxu0 0.0
        %1280 = vmatpush1.msra.mxu0 0.0
        %1281 = vmatprep.subr.mxu0 0.0
        %1282 = vmatpush1.msra.mxu0 0.0
        %1283 = vmatprep.subr.mxu0 0.0
        %1284 = vmatpush1.msra.mxu0 0.0
        %1285 = vmatprep.subr.mxu0 0.0
        %1286 = vmatpush1.msra.mxu0 0.0
        %1287 = vmatprep.subr.mxu0 0.0
        %1288 = vmatpush1.msra.mxu0 0.0
        %1289 = vmatprep.subr.mxu0 0.0
        %1290 = vmatpush1.msra.mxu0 0.0
        %1291 = vmatprep.subr.mxu0 0.0
        %1292 = vmatpush1.msra.mxu0 0.0
        %1293 = vmatprep.subr.mxu0 0.0
        %1294 = vmatpush1.msra.mxu0 0.0
        %1295 = vmatprep.subr.mxu0 0.0
        %1296 = vmatpush1.msra.mxu0 0.0
        %1297 = vmatprep.subr.mxu0 0.0
        %1298 = vmatpush1.msra.mxu0 0.0
        %1299 = vmatprep.subr.mxu0 0.0
        %1300 = vmatpush1.msra.mxu0 0.0
        %1301 = vmatprep.subr.mxu0 0.0
        %1302 = vmatpush1.msra.mxu0 0.0
        %1303 = vmatprep.subr.mxu0 0.0
        %1304 = vmatpush1.msra.mxu0 0.0
        %1305 = vmatprep.subr.mxu0 0.0
        %1306 = vmatpush1.msra.mxu0 0.0
        %1307 = vmatprep.subr.mxu0 0.0
        %1308 = vmatpush1.msra.mxu0 0.0
        %1309 = vmatprep.subr.mxu0 0.0
        %1310 = vmatpush1.msra.mxu0 0.0
        %1311 = vmatprep.subr.mxu0 0.0
        %1312 = vmatpush1.msra.mxu0 0.0
        %1313 = vmatprep.subr.mxu0 0.0
        %1314 = vmatpush1.msra.mxu0 0.0
        %1315 = vmatprep.subr.mxu0 0.0
        %1316 = vmatpush1.msra.mxu0 0.0
        %1317 = vmatprep.subr.mxu0 0.0
        %1318 = vmatpush1.msra.mxu0 0.0
        %1319 = vmatprep.subr.mxu0 0.0
        %1320 = vmatpush1.msra.mxu0 0.0
        %1321 = vmatprep.subr.mxu0 0.0
        %1322 = vmatpush1.msra.mxu0 0.0
        %1323 = vmatprep.subr.mxu0 0.0
        %1324 = vmatpush1.msra.mxu0 0.0
        %1325 = vmatprep.subr.mxu0 0.0
        %1326 = vmatpush1.msra.mxu0 0.0
        %1327 = vmatprep.subr.mxu0 0.0
        %1328 = vmatpush1.msra.mxu0 0.0
        %1329 = vmatprep.mubr.f32.mxu0 0.0
        %1330 = vmatmul.mubr.f32.gmra.mrb[0].mxu0 %v1263
        %v1331 = vpop.f32.mrb[0].mxu0
        %v1332 = vadd.f32 %v1258, %v1331
        %v1333 = vpop.f32.mrb[0].mxu0
        %1334 = vdwg.mxu0
        %v1335 = vmax.f32 %v1332, 0.0
        %v1336 = vsel %vm423, %v1335, 0.0
        %1337 = vadd.xlane.f32.xlu0 %v1336
        %v1338 = vpop.xlane.xlu0 %1337
        %v1339 = vmul.f32 %v1338, %v427
        %v1340 = vsub.f32 %v1335, %v1339
        %v1341 = vmul.f32 %v1340, %v1340
        %v1342 = vsel %vm423, %v1341, 0.0
        %1343 = vadd.xlane.f32.xlu0 %v1342
        %v1344 = vpop.xlane.xlu0 %1343
        %v1345 = vmul.f32 %v1344, %v427
        %v1346 = vadd.f32 %v1345, 1e-05
        %v1347 = vrsqrt.pop %v1346
        %v1348 = vmul.f32 %v1340, %v1347
        %v1349 = vlaneseq
        %v1350 = vshrl.u32 %v1349, 7
        %v1351 = vsub.s32 2, %v1350
        %v1352 = vrot.slane %v331, %v1351
        %v1353 = vmul.f32 %v1348, %v1352
        %v1354 = vlaneseq
        %v1355 = vshrl.u32 %v1354, 7
        %v1356 = vsub.s32 5, %v1355
        %v1357 = vrot.slane %v331, %v1356
        %v1358 = vadd.f32 %v1353, %v1357
        %v1359 = vlaneseq
        %v1360 = vshrl.u32 %v1359, 7
        %v1361 = vsub.s32 0, %v1360
        %v1362 = vrot.slane %v332, %v1361
        %v1364 = vsel %vm423, %v1358, 0
        %1366 = vmatprep.subr.mxu0 0.0
        %1367 = vmatpush1.msra.mxu0 %v324
        %1368 = vmatprep.subr.mxu0 0.0
        %1369 = vmatpush1.msra.mxu0 %v325
        %1370 = vmatprep.subr.mxu0 0.0
        %1371 = vmatpush1.msra.mxu0 %v326
        %1372 = vmatprep.subr.mxu0 0.0
        %1373 = vmatpush1.msra.mxu0 %v327
        %1374 = vmatprep.subr.mxu0 0.0
        %1375 = vmatpush1.msra.mxu0 0.0
        %1376 = vmatprep.subr.mxu0 0.0
        %1377 = vmatpush1.msra.mxu0 0.0
        %1378 = vmatprep.subr.mxu0 0.0
        %1379 = vmatpush1.msra.mxu0 0.0
        %1380 = vmatprep.subr.mxu0 0.0
        %1381 = vmatpush1.msra.mxu0 0.0
        %1382 = vmatprep.subr.mxu0 0.0
        %1383 = vmatpush1.msra.mxu0 0.0
        %1384 = vmatprep.subr.mxu0 0.0
        %1385 = vmatpush1.msra.mxu0 0.0
        %1386 = vmatprep.subr.mxu0 0.0
        %1387 = vmatpush1.msra.mxu0 0.0
        %1388 = vmatprep.subr.mxu0 0.0
        %1389 = vmatpush1.msra.mxu0 0.0
        %1390 = vmatprep.subr.mxu0 0.0
        %1391 = vmatpush1.msra.mxu0 0.0
        %1392 = vmatprep.subr.mxu0 0.0
        %1393 = vmatpush1.msra.mxu0 0.0
        %1394 = vmatprep.subr.mxu0 0.0
        %1395 = vmatpush1.msra.mxu0 0.0
        %1396 = vmatprep.subr.mxu0 0.0
        %1397 = vmatpush1.msra.mxu0 0.0
        %1398 = vmatprep.subr.mxu0 0.0
        %1399 = vmatpush1.msra.mxu0 0.0
        %1400 = vmatprep.subr.mxu0 0.0
        %1401 = vmatpush1.msra.mxu0 0.0
        %1402 = vmatprep.subr.mxu0 0.0
        %1403 = vmatpush1.msra.mxu0 0.0
        %1404 = vmatprep.subr.mxu0 0.0
        %1405 = vmatpush1.msra.mxu0 0.0
        %1406 = vmatprep.subr.mxu0 0.0
        %1407 = vmatpush1.msra.mxu0 0.0
        %1408 = vmatprep.subr.mxu0 0.0
        %1409 = vmatpush1.msra.mxu0 0.0
        %1410 = vmatprep.subr.mxu0 0.0
        %1411 = vmatpush1.msra.mxu0 0.0
        %1412 = vmatprep.subr.mxu0 0.0
        %1413 = vmatpush1.msra.mxu0 0.0
        %1414 = vmatprep.subr.mxu0 0.0
        %1415 = vmatpush1.msra.mxu0 0.0
        %1416 = vmatprep.subr.mxu0 0.0
        %1417 = vmatpush1.msra.mxu0 0.0
        %1418 = vmatprep.subr.mxu0 0.0
        %1419 = vmatpush1.msra.mxu0 0.0
        %1420 = vmatprep.subr.mxu0 0.0
        %1421 = vmatpush1.msra.mxu0 0.0
        %1422 = vmatprep.subr.mxu0 0.0
        %1423 = vmatpush1.msra.mxu0 0.0
        %1424 = vmatprep.subr.mxu0 0.0
        %1425 = vmatpush1.msra.mxu0 0.0
        %1426 = vmatprep.subr.mxu0 0.0
        %1427 = vmatpush1.msra.mxu0 0.0
        %1428 = vmatprep.subr.mxu0 0.0
        %1429 = vmatpush1.msra.mxu0 0.0
        %1430 = vmatprep.mubr.f32.mxu0 0.0
        %1431 = vmatmul.mubr.f32.gmra.mrb[0].mxu0 %v1364
        %v1432 = vpop.f32.mrb[0].mxu0
        %v1433 = vadd.f32 %v1362, %v1432
        %v1434 = vpop.f32.mrb[0].mxu0
        %1435 = vdwg.mxu0
        %v1436 = vmax.f32 %v1433, 0.0
        %v1437 = vadd.f32 %v1248, %v1436
        %1438 = vmatprep.subr.mxu0 0.0
        %1439 = vmatpush1.msra.mxu0 %v300
        %1440 = vmatprep.subr.mxu0 0.0
        %1441 = vmatpush1.msra.mxu0 %v301
        %1442 = vmatprep.subr.mxu0 0.0
        %1443 = vmatpush1.msra.mxu0 %v302
        %1444 = vmatprep.subr.mxu0 0.0
        %1445 = vmatpush1.msra.mxu0 %v303
        %1446 = vmatprep.subr.mxu0 0.0
        %1447 = vmatpush1.msra.mxu0 0.0
        %1448 = vmatprep.subr.mxu0 0.0
        %1449 = vmatpush1.msra.mxu0 0.0
        %1450 = vmatprep.subr.mxu0 0.0
        %1451 = vmatpush1.msra.mxu0 0.0
        %1452 = vmatprep.subr.mxu0 0.0
        %1453 = vmatpush1.msra.mxu0 0.0
        %1454 = vmatprep.subr.mxu0 0.0
        %1455 = vmatpush1.msra.mxu0 0.0
        %1456 = vmatprep.subr.mxu0 0.0
        %1457 = vmatpush1.msra.mxu0 0.0
        %1458 = vmatprep.subr.mxu0 0.0
        %1459 = vmatpush1.msra.mxu0 0.0
        %1460 = vmatprep.subr.mxu0 0.0
        %1461 = vmatpush1.msra.mxu0 0.0
        %1462 = vmatprep.subr.mxu0 0.0
        %1463 = vmatpush1.msra.mxu0 0.0
        %1464 = vmatprep.subr.mxu0 0.0
        %1465 = vmatpush1.msra.mxu0 0.0
        %1466 = vmatprep.subr.mxu0 0.0
        %1467 = vmatpush1.msra.mxu0 0.0
        %1468 = vmatprep.subr.mxu0 0.0
        %1469 = vmatpush1.msra.mxu0 0.0
        %1470 = vmatprep.subr.mxu0 0.0
        %1471 = vmatpush1.msra.mxu0 0.0
        %1472 = vmatprep.subr.mxu0 0.0
        %1473 = vmatpush1.msra.mxu0 0.0
        %1474 = vmatprep.subr.mxu0 0.0
        %1475 = vmatpush1.msra.mxu0 0.0
        %1476 = vmatprep.subr.mxu0 0.0
        %1477 = vmatpush1.msra.mxu0 0.0
        %1478 = vmatprep.subr.mxu0 0.0
        %1479 = vmatpush1.msra.mxu0 0.0
        %1480 = vmatprep.subr.mxu0 0.0
        %1481 = vmatpush1.msra.mxu0 0.0
        %1482 = vmatprep.subr.mxu0 0.0
        %1483 = vmatpush1.msra.mxu0 0.0
        %1484 = vmatprep.subr.mxu0 0.0
        %1485 = vmatpush1.msra.mxu0 0.0
        %1486 = vmatprep.subr.mxu0 0.0
        %1487 = vmatpush1.msra.mxu0 0.0
        %1488 = vmatprep.subr.mxu0 0.0
        %1489 = vmatpush1.msra.mxu0 0.0
        %1490 = vmatprep.subr.mxu0 0.0
        %1491 = vmatpush1.msra.mxu0 0.0
        %1492 = vmatprep.subr.mxu0 0.0
        %1493 = vmatpush1.msra.mxu0 0.0
        %1494 = vmatprep.subr.mxu0 0.0
        %1495 = vmatpush1.msra.mxu0 0.0
        %1496 = vmatprep.subr.mxu0 0.0
        %1497 = vmatpush1.msra.mxu0 0.0
        %1498 = vmatprep.subr.mxu0 0.0
        %1499 = vmatpush1.msra.mxu0 0.0
        %1500 = vmatprep.subr.mxu0 0.0
        %1501 = vmatpush1.msra.mxu0 0.0
        %1502 = vmatprep.mubr.f32.mxu0 0.0
        %1503 = vmatmul.mubr.f32.gmra.mrb[0].mxu0 %v982
        %v1504 = vpop.f32.mrb[0].mxu0
        %v1505 = vadd.f32 0.0, %v1504
        %v1506 = vpop.f32.mrb[0].mxu0
        %1507 = vdwg.mxu0
        %1508 = vrot.lane.b32.xlu0 %v277, 126
        %v1509 = vpop.permute.xlu0 %1508
        %v1510 = vsel %vm423, %v1509, 0
        %1512 = vmatprep.subr.mxu0 0.0
        %1513 = vmatpush1.msra.mxu0 %v296
        %1514 = vmatprep.subr.mxu0 0.0
        %1515 = vmatpush1.msra.mxu0 %v297
        %1516 = vmatprep.subr.mxu0 0.0
        %1517 = vmatpush1.msra.mxu0 %v298
        %1518 = vmatprep.subr.mxu0 0.0
        %1519 = vmatpush1.msra.mxu0 %v299
        %1520 = vmatprep.subr.mxu0 0.0
        %1521 = vmatpush1.msra.mxu0 0.0
        %1522 = vmatprep.subr.mxu0 0.0
        %1523 = vmatpush1.msra.mxu0 0.0
        %1524 = vmatprep.subr.mxu0 0.0
        %1525 = vmatpush1.msra.mxu0 0.0
        %1526 = vmatprep.subr.mxu0 0.0
        %1527 = vmatpush1.msra.mxu0 0.0
        %1528 = vmatprep.subr.mxu0 0.0
        %1529 = vmatpush1.msra.mxu0 0.0
        %1530 = vmatprep.subr.mxu0 0.0
        %1531 = vmatpush1.msra.mxu0 0.0
        %1532 = vmatprep.subr.mxu0 0.0
        %1533 = vmatpush1.msra.mxu0 0.0
        %1534 = vmatprep.subr.mxu0 0.0
        %1535 = vmatpush1.msra.mxu0 0.0
        %1536 = vmatprep.subr.mxu0 0.0
        %1537 = vmatpush1.msra.mxu0 0.0
        %1538 = vmatprep.subr.mxu0 0.0
        %1539 = vmatpush1.msra.mxu0 0.0
        %1540 = vmatprep.subr.mxu0 0.0
        %1541 = vmatpush1.msra.mxu0 0.0
        %1542 = vmatprep.subr.mxu0 0.0
        %1543 = vmatpush1.msra.mxu0 0.0
        %1544 = vmatprep.subr.mxu0 0.0
        %1545 = vmatpush1.msra.mxu0 0.0
        %1546 = vmatprep.subr.mxu0 0.0
        %1547 = vmatpush1.msra.mxu0 0.0
        %1548 = vmatprep.subr.mxu0 0.0
        %1549 = vmatpush1.msra.mxu0 0.0
        %1550 = vmatprep.subr.mxu0 0.0
        %1551 = vmatpush1.msra.mxu0 0.0
        %1552 = vmatprep.subr.mxu0 0.0
        %1553 = vmatpush1.msra.mxu0 0.0
        %1554 = vmatprep.subr.mxu0 0.0
        %1555 = vmatpush1.msra.mxu0 0.0
        %1556 = vmatprep.subr.mxu0 0.0
        %1557 = vmatpush1.msra.mxu0 0.0
        %1558 = vmatprep.subr.mxu0 0.0
        %1559 = vmatpush1.msra.mxu0 0.0
        %1560 = vmatprep.subr.mxu0 0.0
        %1561 = vmatpush1.msra.mxu0 0.0
        %1562 = vmatprep.subr.mxu0 0.0
        %1563 = vmatpush1.msra.mxu0 0.0
        %1564 = vmatprep.subr.mxu0 0.0
        %1565 = vmatpush1.msra.mxu0 0.0
        %1566 = vmatprep.subr.mxu0 0.0
        %1567 = vmatpush1.msra.mxu0 0.0
        %1568 = vmatprep.subr.mxu0 0.0
        %1569 = vmatpush1.msra.mxu0 0.0
        %1570 = vmatprep.subr.mxu0 0.0
        %1571 = vmatpush1.msra.mxu0 0.0
        %1572 = vmatprep.subr.mxu0 0.0
        %1573 = vmatpush1.msra.mxu0 0.0
        %1574 = vmatprep.subr.mxu0 0.0
        %1575 = vmatpush1.msra.mxu0 0.0
        %1576 = vmatprep.mubr.f32.mxu0 0.0
        %1577 = vmatmul.mubr.f32.gmra.mrb[0].mxu0 %v1510
        %v1578 = vpop.f32.mrb[0].mxu0
        %v1579 = vadd.f32 %v1505, %v1578
        %v1580 = vpop.f32.mrb[0].mxu0
        %1581 = vdwg.mxu0
        %1582 = vmatprep.subr.mxu0 0.0
        %1583 = vmatpush1.msra.mxu0 %v304
        %1584 = vmatprep.subr.mxu0 0.0
        %1585 = vmatpush1.msra.mxu0 %v305
        %1586 = vmatprep.subr.mxu0 0.0
        %1587 = vmatpush1.msra.mxu0 %v306
        %1588 = vmatprep.subr.mxu0 0.0
        %1589 = vmatpush1.msra.mxu0 %v307
        %1590 = vmatprep.subr.mxu0 0.0
        %1591 = vmatpush1.msra.mxu0 0.0
        %1592 = vmatprep.subr.mxu0 0.0
        %1593 = vmatpush1.msra.mxu0 0.0
        %1594 = vmatprep.subr.mxu0 0.0
        %1595 = vmatpush1.msra.mxu0 0.0
        %1596 = vmatprep.subr.mxu0 0.0
        %1597 = vmatpush1.msra.mxu0 0.0
        %1598 = vmatprep.subr.mxu0 0.0
        %1599 = vmatpush1.msra.mxu0 0.0
        %1600 = vmatprep.subr.mxu0 0.0
        %1601 = vmatpush1.msra.mxu0 0.0
        %1602 = vmatprep.subr.mxu0 0.0
        %1603 = vmatpush1.msra.mxu0 0.0
        %1604 = vmatprep.subr.mxu0 0.0
        %1605 = vmatpush1.msra.mxu0 0.0
        %1606 = vmatprep.subr.mxu0 0.0
        %1607 = vmatpush1.msra.mxu0 0.0
        %1608 = vmatprep.subr.mxu0 0.0
        %1609 = vmatpush1.msra.mxu0 0.0
        %1610 = vmatprep.subr.mxu0 0.0
        %1611 = vmatpush1.msra.mxu0 0.0
        %1612 = vmatprep.subr.mxu0 0.0
        %1613 = vmatpush1.msra.mxu0 0.0
        %1614 = vmatprep.subr.mxu0 0.0
        %1615 = vmatpush1.msra.mxu0 0.0
        %1616 = vmatprep.subr.mxu0 0.0
        %1617 = vmatpush1.msra.mxu0 0.0
        %1618 = vmatprep.subr.mxu0 0.0
        %1619 = vmatpush1.msra.mxu0 0.0
        %1620 = vmatprep.subr.mxu0 0.0
        %1621 = vmatpush1.msra.mxu0 0.0
        %1622 = vmatprep.subr.mxu0 0.0
        %1623 = vmatpush1.msra.mxu0 0.0
        %1624 = vmatprep.subr.mxu0 0.0
        %1625 = vmatpush1.msra.mxu0 0.0
        %1626 = vmatprep.subr.mxu0 0.0
        %1627 = vmatpush1.msra.mxu0 0.0
        %1628 = vmatprep.subr.mxu0 0.0
        %1629 = vmatpush1.msra.mxu0 0.0
        %1630 = vmatprep.subr.mxu0 0.0
        %1631 = vmatpush1.msra.mxu0 0.0
        %1632 = vmatprep.subr.mxu0 0.0
        %1633 = vmatpush1.msra.mxu0 0.0
        %1634 = vmatprep.subr.mxu0 0.0
        %1635 = vmatpush1.msra.mxu0 0.0
        %1636 = vmatprep.subr.mxu0 0.0
        %1637 = vmatpush1.msra.mxu0 0.0
        %1638 = vmatprep.subr.mxu0 0.0
        %1639 = vmatpush1.msra.mxu0 0.0
        %1640 = vmatprep.subr.mxu0 0.0
        %1641 = vmatpush1.msra.mxu0 0.0
        %1642 = vmatprep.subr.mxu0 0.0
        %1643 = vmatpush1.msra.mxu0 0.0
        %1644 = vmatprep.subr.mxu0 0.0
        %1645 = vmatpush1.msra.mxu0 0.0
        %1646 = vmatprep.mubr.f32.mxu0 0.0
        %1647 = vmatmul.mubr.f32.gmra.mrb[0].mxu0 %v531
        %v1648 = vpop.f32.mrb[0].mxu0
        %v1649 = vadd.f32 0.0, %v1648
        %v1650 = vpop.f32.mrb[0].mxu0
        %1651 = vdwg.mxu0
        %v1652 = vadd.f32 %v1579, %v1649
        %1653 = vmatprep.subr.mxu0 0.0
        %1654 = vmatpush1.msra.mxu0 %v308
        %1655 = vmatprep.subr.mxu0 0.0
        %1656 = vmatpush1.msra.mxu0 %v309
        %1657 = vmatprep.subr.mxu0 0.0
        %1658 = vmatpush1.msra.mxu0 %v310
        %1659 = vmatprep.subr.mxu0 0.0
        %1660 = vmatpush1.msra.mxu0 %v311
        %1661 = vmatprep.subr.mxu0 0.0
        %1662 = vmatpush1.msra.mxu0 0.0
        %1663 = vmatprep.subr.mxu0 0.0
        %1664 = vmatpush1.msra.mxu0 0.0
        %1665 = vmatprep.subr.mxu0 0.0
        %1666 = vmatpush1.msra.mxu0 0.0
        %1667 = vmatprep.subr.mxu0 0.0
        %1668 = vmatpush1.msra.mxu0 0.0
        %1669 = vmatprep.subr.mxu0 0.0
        %1670 = vmatpush1.msra.mxu0 0.0
        %1671 = vmatprep.subr.mxu0 0.0
        %1672 = vmatpush1.msra.mxu0 0.0
        %1673 = vmatprep.subr.mxu0 0.0
        %1674 = vmatpush1.msra.mxu0 0.0
        %1675 = vmatprep.subr.mxu0 0.0
        %1676 = vmatpush1.msra.mxu0 0.0
        %1677 = vmatprep.subr.mxu0 0.0
        %1678 = vmatpush1.msra.mxu0 0.0
        %1679 = vmatprep.subr.mxu0 0.0
        %1680 = vmatpush1.msra.mxu0 0.0
        %1681 = vmatprep.subr.mxu0 0.0
        %1682 = vmatpush1.msra.mxu0 0.0
        %1683 = vmatprep.subr.mxu0 0.0
        %1684 = vmatpush1.msra.mxu0 0.0
        %1685 = vmatprep.subr.mxu0 0.0
        %1686 = vmatpush1.msra.mxu0 0.0
        %1687 = vmatprep.subr.mxu0 0.0
        %1688 = vmatpush1.msra.mxu0 0.0
        %1689 = vmatprep.subr.mxu0 0.0
        %1690 = vmatpush1.msra.mxu0 0.0
        %1691 = vmatprep.subr.mxu0 0.0
        %1692 = vmatpush1.msra.mxu0 0.0
        %1693 = vmatprep.subr.mxu0 0.0
        %1694 = vmatpush1.msra.mxu0 0.0
        %1695 = vmatprep.subr.mxu0 0.0
        %1696 = vmatpush1.msra.mxu0 0.0
        %1697 = vmatprep.subr.mxu0 0.0
        %1698 = vmatpush1.msra.mxu0 0.0
        %1699 = vmatprep.subr.mxu0 0.0
        %1700 = vmatpush1.msra.mxu0 0.0
        %1701 = vmatprep.subr.mxu0 0.0
        %1702 = vmatpush1.msra.mxu0 0.0
        %1703 = vmatprep.subr.mxu0 0.0
        %1704 = vmatpush1.msra.mxu0 0.0
        %1705 = vmatprep.subr.mxu0 0.0
        %1706 = vmatpush1.msra.mxu0 0.0
        %1707 = vmatprep.subr.mxu0 0.0
        %1708 = vmatpush1.msra.mxu0 0.0
        %1709 = vmatprep.subr.mxu0 0.0
        %1710 = vmatpush1.msra.mxu0 0.0
        %1711 = vmatprep.subr.mxu0 0.0
        %1712 = vmatpush1.msra.mxu0 0.0
        %1713 = vmatprep.subr.mxu0 0.0
        %1714 = vmatpush1.msra.mxu0 0.0
        %1715 = vmatprep.subr.mxu0 0.0
        %1716 = vmatpush1.msra.mxu0 0.0
        %1717 = vmatprep.mubr.f32.mxu0 0.0
        %1718 = vmatmul.mubr.f32.gmra.mrb[0].mxu0 %v1060
        %v1719 = vpop.f32.mrb[0].mxu0
        %v1720 = vadd.f32 0.0, %v1719
        %v1721 = vpop.f32.mrb[0].mxu0
        %1722 = vdwg.mxu0
        %v1723 = vadd.f32 %v1652, %v1720
        %vm1724 = vcmask 1043456
        %v1725 = vrot.slane %v277, 4
        %v1726 = vrot.slane %v278, 4
        %v1727 = vsel %vm1724, %v1725, %v1726
        %1728 = vrot.lane.b32.xlu0 %v1727, 126
        %v1729 = vpop.permute.xlu0 %1728
        %v1730 = vsel %vm423, %v1729, 0
        %1732 = vmatprep.subr.mxu0 0.0
        %1733 = vmatpush1.msra.mxu0 %v312
        %1734 = vmatprep.subr.mxu0 0.0
        %1735 = vmatpush1.msra.mxu0 %v313
        %1736 = vmatprep.subr.mxu0 0.0
        %1737 = vmatpush1.msra.mxu0 %v314
        %1738 = vmatprep.subr.mxu0 0.0
        %1739 = vmatpush1.msra.mxu0 %v315
        %1740 = vmatprep.subr.mxu0 0.0
        %1741 = vmatpush1.msra.mxu0 0.0
        %1742 = vmatprep.subr.mxu0 0.0
        %1743 = vmatpush1.msra.mxu0 0.0
        %1744 = vmatprep.subr.mxu0 0.0
        %1745 = vmatpush1.msra.mxu0 0.0
        %1746 = vmatprep.subr.mxu0 0.0
        %1747 = vmatpush1.msra.mxu0 0.0
        %1748 = vmatprep.subr.mxu0 0.0
        %1749 = vmatpush1.msra.mxu0 0.0
        %1750 = vmatprep.subr.mxu0 0.0
        %1751 = vmatpush1.msra.mxu0 0.0
        %1752 = vmatprep.subr.mxu0 0.0
        %1753 = vmatpush1.msra.mxu0 0.0
        %1754 = vmatprep.subr.mxu0 0.0
        %1755 = vmatpush1.msra.mxu0 0.0
        %1756 = vmatprep.subr.mxu0 0.0
        %1757 = vmatpush1.msra.mxu0 0.0
        %1758 = vmatprep.subr.mxu0 0.0
        %1759 = vmatpush1.msra.mxu0 0.0
        %1760 = vmatprep.subr.mxu0 0.0
        %1761 = vmatpush1.msra.mxu0 0.0
        %1762 = vmatprep.subr.mxu0 0.0
        %1763 = vmatpush1.msra.mxu0 0.0
        %1764 = vmatprep.subr.mxu0 0.0
        %1765 = vmatpush1.msra.mxu0 0.0
        %1766 = vmatprep.subr.mxu0 0.0
        %1767 = vmatpush1.msra.mxu0 0.0
        %1768 = vmatprep.subr.mxu0 0.0
        %1769 = vmatpush1.msra.mxu0 0.0
        %1770 = vmatprep.subr.mxu0 0.0
        %1771 = vmatpush1.msra.mxu0 0.0
        %1772 = vmatprep.subr.mxu0 0.0
        %1773 = vmatpush1.msra.mxu0 0.0
        %1774 = vmatprep.subr.mxu0 0.0
        %1775 = vmatpush1.msra.mxu0 0.0
        %1776 = vmatprep.subr.mxu0 0.0
        %1777 = vmatpush1.msra.mxu0 0.0
        %1778 = vmatprep.subr.mxu0 0.0
        %1779 = vmatpush1.msra.mxu0 0.0
        %1780 = vmatprep.subr.mxu0 0.0
        %1781 = vmatpush1.msra.mxu0 0.0
        %1782 = vmatprep.subr.mxu0 0.0
        %1783 = vmatpush1.msra.mxu0 0.0
        %1784 = vmatprep.subr.mxu0 0.0
        %1785 = vmatpush1.msra.mxu0 0.0
        %1786 = vmatprep.subr.mxu0 0.0
        %1787 = vmatpush1.msra.mxu0 0.0
        %1788 = vmatprep.subr.mxu0 0.0
        %1789 = vmatpush1.msra.mxu0 0.0
        %1790 = vmatprep.subr.mxu0 0.0
        %1791 = vmatpush1.msra.mxu0 0.0
        %1792 = vmatprep.subr.mxu0 0.0
        %1793 = vmatpush1.msra.mxu0 0.0
        %1794 = vmatprep.subr.mxu0 0.0
        %1795 = vmatpush1.msra.mxu0 0.0
        %1796 = vmatprep.mubr.f32.mxu0 0.0
        %1797 = vmatmul.mubr.f32.gmra.mrb[0].mxu0 %v1730
        %v1798 = vpop.f32.mrb[0].mxu0
        %v1799 = vadd.f32 0.0, %v1798
        %v1800 = vpop.f32.mrb[0].mxu0
        %1801 = vdwg.mxu0
        %v1802 = vadd.f32 %v1723, %v1799
        %v1803 = vlaneseq
        %v1804 = vshrl.u32 %v1803, 7
        %v1805 = vsub.s32 3, %v1804
        %v1806 = vrot.slane %v332, %v1805
        %v1807 = vadd.f32 %v1802, %v1806
        %v1808 = vmax.f32 %v1807, 0.0
        %v1809 = vsel %vm423, %v1808, 0.0
        %v1810 = vrot.slane %v1809, 4
        %v1811 = vadd.f32 %v1809, %v1810
        %v1812 = vrot.slane %v1811, 2
        %v1813 = vadd.f32 %v1811, %v1812
        %v1814 = vrot.slane %v1813, 1
        %v1815 = vadd.f32 %v1813, %v1814
        %v1816 = vmul.f32 %v1815, %v611
        %v1817 = vsub.f32 %v1808, %v1816
        %v1818 = vmul.f32 %v1817, %v1817
        %v1819 = vsel %vm423, %v1818, 0.0
        %v1820 = vrot.slane %v1819, 4
        %v1821 = vadd.f32 %v1819, %v1820
        %v1822 = vrot.slane %v1821, 2
        %v1823 = vadd.f32 %v1821, %v1822
        %v1824 = vrot.slane %v1823, 1
        %v1825 = vadd.f32 %v1823, %v1824
        %v1826 = vmul.f32 %v1825, %v611
        %v1827 = vadd.f32 %v1826, 1e-05
        %v1828 = vrsqrt.pop %v1827
        %v1829 = vmul.f32 %v1817, %v1828
        %1830 = vset.pattern.permute.xlu0 5
        %1831 = vperm.xlu0 %1830, %v333
        %v1832 = vpop.permute.xlu0 %1831
        %v1834 = vmul.f32 %v1829, %v1832
        %1835 = vset.pattern.permute.xlu0 8
        %1836 = vperm.xlu0 %1835, %v333
        %v1837 = vpop.permute.xlu0 %1836
        %v1839 = vadd.f32 %v1834, %v1837
        %1840 = vset.pattern.permute.xlu0 11
        %1841 = vperm.xlu0 %1840, %v333
        %v1842 = vpop.permute.xlu0 %1841
        %v1845 = vsel %vm348, %v330, 0
        %1847 = vmatprep.subr.mxu0 0.0
        %1848 = vmatpush1.msra.mxu0 %v1839
        %1849 = vmatprep.subr.mxu0 0.0
        %1850 = vmatpush1.msra.mxu0 0.0
        %1851 = vmatprep.subr.mxu0 0.0
        %1852 = vmatpush1.msra.mxu0 0.0
        %1853 = vmatprep.subr.mxu0 0.0
        %1854 = vmatpush1.msra.mxu0 0.0
        %1855 = vmatprep.subr.mxu0 0.0
        %1856 = vmatpush1.msra.mxu0 0.0
        %1857 = vmatprep.subr.mxu0 0.0
        %1858 = vmatpush1.msra.mxu0 0.0
        %1859 = vmatprep.subr.mxu0 0.0
        %1860 = vmatpush1.msra.mxu0 0.0
        %1861 = vmatprep.subr.mxu0 0.0
        %1862 = vmatpush1.msra.mxu0 0.0
        %1863 = vmatprep.subr.mxu0 0.0
        %1864 = vmatpush1.msra.mxu0 0.0
        %1865 = vmatprep.subr.mxu0 0.0
        %1866 = vmatpush1.msra.mxu0 0.0
        %1867 = vmatprep.subr.mxu0 0.0
        %1868 = vmatpush1.msra.mxu0 0.0
        %1869 = vmatprep.subr.mxu0 0.0
        %1870 = vmatpush1.msra.mxu0 0.0
        %1871 = vmatprep.subr.mxu0 0.0
        %1872 = vmatpush1.msra.mxu0 0.0
        %1873 = vmatprep.subr.mxu0 0.0
        %1874 = vmatpush1.msra.mxu0 0.0
        %1875 = vmatprep.subr.mxu0 0.0
        %1876 = vmatpush1.msra.mxu0 0.0
        %1877 = vmatprep.subr.mxu0 0.0
        %1878 = vmatpush1.msra.mxu0 0.0
        %1879 = vmatprep.subr.mxu0 0.0
        %1880 = vmatpush1.msra.mxu0 0.0
        %1881 = vmatprep.subr.mxu0 0.0
        %1882 = vmatpush1.msra.mxu0 0.0
        %1883 = vmatprep.subr.mxu0 0.0
        %1884 = vmatpush1.msra.mxu0 0.0
        %1885 = vmatprep.subr.mxu0 0.0
        %1886 = vmatpush1.msra.mxu0 0.0
        %1887 = vmatprep.subr.mxu0 0.0
        %1888 = vmatpush1.msra.mxu0 0.0
        %1889 = vmatprep.subr.mxu0 0.0
        %1890 = vmatpush1.msra.mxu0 0.0
        %1891 = vmatprep.subr.mxu0 0.0
        %1892 = vmatpush1.msra.mxu0 0.0
        %1893 = vmatprep.subr.mxu0 0.0
        %1894 = vmatpush1.msra.mxu0 0.0
        %1895 = vmatprep.subr.mxu0 0.0
        %1896 = vmatpush1.msra.mxu0 0.0
        %1897 = vmatprep.subr.mxu0 0.0
        %1898 = vmatpush1.msra.mxu0 0.0
        %1899 = vmatprep.subr.mxu0 0.0
        %1900 = vmatpush1.msra.mxu0 0.0
        %1901 = vmatprep.subr.mxu0 0.0
        %1902 = vmatpush1.msra.mxu0 0.0
        %1903 = vmatprep.subr.mxu0 0.0
        %1904 = vmatpush1.msra.mxu0 0.0
        %1905 = vmatprep.subr.mxu0 0.0
        %1906 = vmatpush1.msra.mxu0 0.0
        %1907 = vmatprep.subr.mxu0 0.0
        %1908 = vmatpush1.msra.mxu0 0.0
        %1909 = vmatprep.subr.mxu0 0.0
        %1910 = vmatpush1.msra.mxu0 0.0
        %1911 = vmatprep.mubr.f32.mxu0 0.0
        %1912 = vmatmul.mubr.f32.gmra.mrb[0].mxu0 %v1845
        %v1913 = vpop.f32.mrb[0].mxu0
        %v1914 = vadd.f32 %v1842, %v1913
        %v1915 = vpop.f32.mrb[0].mxu0
        %1916 = vdwg.mxu0
        %v1917 = vmax.f32 %v1914, 0.0
        %v1918 = vadd.f32 %v1437, %v1917
        %v1919 = vsel %vm423, %v1918, 0.0
        %1920 = vadd.xlane.f32.xlu0 %v1919
        %v1921 = vpop.xlane.xlu0 %1920
        %v1922 = vmul.f32 %v1921, %v427
        %v1923 = vsub.f32 %v1918, %v1922
        %v1924 = vmul.f32 %v1923, %v1923
        %v1925 = vsel %vm423, %v1924, 0.0
        %1926 = vadd.xlane.f32.xlu0 %v1925
        %v1927 = vpop.xlane.xlu0 %1926
        %v1928 = vrcp.pop 31.0
        %v1929 = vmul.f32 %v1927, %v1928
        %v1930 = vrsqrt.pop %v1929
        %v1931 = vmul.f32 %v1929, %v1930
        %vm1932 = vcmp.eq.f32.partialorder %v1929, inf
        %v1933 = vsel %vm1932, %v1929, %v1931
        %vm1934 = vcmp.eq.f32.partialorder %v1929, 0.0
        %v1935 = vand.u32 %v1929, 2147483648
        %v1936 = vsel %vm1934, %v1935, %v1933
        %v1937 = vadd.f32 %v1936, 1e-06
        %v1938 = vrcp.pop %v1937
        %v1939 = vlaneseq
        %v1940 = vshrl.u32 %v1939, 7
        %v1941 = vsub.s32 4, %v1940
        %v1942 = vrot.slane %v332, %v1941
        %v1943 = vmul.f32 %v1942, %v1923
        %v1944 = vmul.f32 %v1943, %v1938
        %v1945 = vlaneseq
        %v1946 = vshrl.u32 %v1945, 7
        %v1947 = vsub.s32 5, %v1946
        %v1948 = vrot.slane %v332, %v1947
        %v1949 = vadd.f32 %v1944, %v1948
        %1950 = vst.msk [vmem:[%s271] sm:$0xff] %vm423, %v1949
        %s1951 = sand.u32 %s181, 1
        %s1952 = scalar_lea.sflag [#allocation3], %s1951
        %s1953 = sand.u32 %s181, 1
        %s1954 = smul.addr %s1953, 8
        %s1955 = scalar_lea.vmem [#allocation2], %s1954
        // Predicated region
        $region49: #{multi_transformer_layer.1} parent=47 // pred_check
          %p1956 = pneg %p191
        $region50: #{multi_transformer_layer.1} parent=47 // pred_check_branch
          %1958 = sbr.rel (%p1956) target = $region52
        $region51: #{multi_transformer_layer.1} parent=47 // pred_region
          %s1960 = ssub.s32 128, 128
          %1961 = vsyncadd %s1952, %s1960
          %s1962 = smul.addr %s21, 128
          %s1963 = scalar_lea.hbm %s7, %s1962
          %s1965 = sshll.u32 %s1955, 4
          %s1966 = int_to_ptr.vmem [resolvable:$true] %s1965
          %1968 = dma.vmem_to_hbm [thread:$0]  %s1966, 128, %s1963, %s1952
        $region52: #{multi_transformer_layer.1} parent=47 // pred_fallthru
          _
      $region48: #{multi_transformer_layer.1} parent=5 // pred_fallthru
        _
      %p1969 = scmp.le.s32.totalorder 2, %s16
      // Predicated region
      $region53: #{multi_transformer_layer.1} parent=5 // pred_check
        %p1970 = pneg %p1969
      $region54: #{multi_transformer_layer.1} parent=5 // pred_check_branch
        %1972 = sbr.rel (%p1970) target = $region56
      $region55: #{multi_transformer_layer.1} parent=5 // pred_region
        %s1973 = ssub.s32 %s16, 2
        // Predicated region
        $region57: #{multi_transformer_layer.1} parent=55 // pred_check
          %p1974 = pneg %p197
        $region58: #{multi_transformer_layer.1} parent=55 // pred_check_branch
          %1976 = sbr.rel (%p1974) target = $region60
        $region59: #{multi_transformer_layer.1} parent=55 // pred_region
          %s1977 = sand.u32 %s182, 1
          %s1978 = scalar_lea.sflag [#allocation3], %s1977
          %s1979 = sand.u32 %s182, 1
          %s1980 = smul.addr %s1979, 8
          %s1981 = scalar_lea.vmem [#allocation2], %s1980
          %1982 = dma.done %s1978, 128
        $region60: #{multi_transformer_layer.1} parent=55 // pred_fallthru
          _
      $region56: #{multi_transformer_layer.1} parent=5 // pred_fallthru
        _
    $region6: #{multi_transformer_layer.1} parent=1 // loop_footer
      %s20 = sadd.s32 1, %s16
    $region7: #{multi_transformer_layer.1} parent=1 // loop_footer_branch
      %15 = sbr.rel target = $region3
    $region8: #{multi_transformer_layer.1} parent=1 // loop_exit
      _
    %1983 = vsyncpa [#allocation3], 1
    %s1984 = scalar_lea.sflag [#allocation3], 1
    %1985 = vsyncpa %s1984, 1

</llo_original>
